<compile_context>
chip_gen: v7x
topology: tpu7x:2x2x1
jax: 0.10.0
libtpu: 0.0.40
codegen_flags: <defaults>
</compile_context>

<pallas_src>
import jax
import jax.numpy as jnp
from jax.experimental import pallas as pl
from jax.experimental.pallas import tpu as pltpu

IN_DIM = 1024
HIDDEN = 512
OUT_DIM = 10
OUT_PAD = 128          # lane-dense padded output width (multiple of 128)
MAX_TILE = 512         # batch-tile rows; sized against v7x VMEM


def _round_up(x, m):
    return (x + m - 1) // m * m


def mlp_kernel(x_ref, w1_ref, b1_ref, w2_ref, b2_ref, o_ref):
    # fc1: bf16 MXU matmul with f32 accumulation, then bias + ReLU in f32.
    x_bf16 = x_ref[...].astype(jnp.bfloat16)
    h = jnp.dot(x_bf16, w1_ref[...], preferred_element_type=jnp.float32)
    h = jnp.maximum(h + b1_ref[...], 0.0)
    # fc2 into a lane-dense (TB, 128) block; columns >= OUT_DIM are zero.
    out = jnp.dot(h.astype(jnp.bfloat16), w2_ref[...],
                  preferred_element_type=jnp.float32)
    o_ref[...] = (out + b2_ref[...]).astype(o_ref.dtype)


def simple_model_forward(x, w1, b1, w2, b2):
    """x: (B, 1024) f32 -> (B, 10) f32."""
    B = x.shape[0]

    # bf16 weights (halves HBM read of w1/w2); biases stay f32.
    w1b = w1.astype(jnp.bfloat16)
    w2b = jnp.zeros((HIDDEN, OUT_PAD), jnp.bfloat16).at[:, :OUT_DIM].set(
        w2.astype(jnp.bfloat16))
    b2p = jnp.zeros((1, OUT_PAD), jnp.float32).at[:, :OUT_DIM].set(b2)

    # Batch tile: multiple of 8 sublanes (f32), capped at MAX_TILE rows.
    tb = min(MAX_TILE, _round_up(B, 8))
    b_pad = _round_up(B, tb)
    if b_pad != B:
        x = jnp.pad(x, ((0, b_pad - B), (0, 0)))
    grid = (b_pad // tb,)

    flops = 2 * b_pad * IN_DIM * HIDDEN + 2 * b_pad * HIDDEN * OUT_PAD
    bytes_accessed = (b_pad * IN_DIM * 4          # x (f32)
                      + IN_DIM * HIDDEN * 2       # w1 (bf16)
                      + HIDDEN * OUT_PAD * 2      # w2 padded (bf16)
                      + HIDDEN * 4 + OUT_PAD * 4  # biases (f32)
                      + b_pad * OUT_PAD * 4)      # out (f32)

    out = pl.pallas_call(
        mlp_kernel,
        out_shape=jax.ShapeDtypeStruct((b_pad, OUT_PAD), jnp.float32),
        grid=grid,
        in_specs=[
            pl.BlockSpec((tb, IN_DIM), lambda i: (i, 0)),      # streamed per tile
            pl.BlockSpec((IN_DIM, HIDDEN), lambda i: (0, 0)),  # VMEM-resident
            pl.BlockSpec((1, HIDDEN), lambda i: (0, 0)),
            pl.BlockSpec((HIDDEN, OUT_PAD), lambda i: (0, 0)),
            pl.BlockSpec((1, OUT_PAD), lambda i: (0, 0)),
        ],
        out_specs=pl.BlockSpec((tb, OUT_PAD), lambda i: (i, 0)),
        compiler_params=pltpu.CompilerParams(
            dimension_semantics=("parallel",)),
        cost_estimate=pl.CostEstimate(
            flops=flops, transcendentals=0, bytes_accessed=bytes_accessed),
    )(x, w1b, b1, w2b, b2p)

    return out[:B, :OUT_DIM]


simple_model_forward_jit = jax.jit(simple_model_forward)


def init_params(key):
    """Deterministic init mimicking PyTorch nn.Linear (uniform +-1/sqrt(fan_in))."""
    k1, k2, k3, k4 = jax.random.split(key, 4)
    bound1 = 1.0 / jnp.sqrt(IN_DIM)
    bound2 = 1.0 / jnp.sqrt(HIDDEN)
    w1 = jax.random.uniform(k1, (IN_DIM, HIDDEN), jnp.float32, -bound1, bound1)
    b1 = jax.random.uniform(k2, (1, HIDDEN), jnp.float32, -bound1, bound1)
    w2 = jax.random.uniform(k3, (HIDDEN, OUT_DIM), jnp.float32, -bound2, bound2)
    b2 = jax.random.uniform(k4, (1, OUT_DIM), jnp.float32, -bound2, bound2)
    return w1, b1, w2, b2


def _reference_bf16(x, w1, b1, w2, b2):
    """Pure-JAX reference mirroring the kernel's bf16-in / f32-accumulate numerics."""
    h = jnp.dot(x.astype(jnp.bfloat16), w1.astype(jnp.bfloat16),
                preferred_element_type=jnp.float32) + b1
    h = jnp.maximum(h, 0.0)
    return jnp.dot(h.astype(jnp.bfloat16), w2.astype(jnp.bfloat16),
                   preferred_element_type=jnp.float32) + b2


if __name__ == "__main__":
    key = jax.random.PRNGKey(0)
    kx, kx2, kp = jax.random.split(key, 3)
    w1, b1, w2, b2 = init_params(kp)

    # Small batch (single grid step).
    B = 8
    x = jax.random.normal(kx, (B, IN_DIM), jnp.float32)
    out = jax.block_until_ready(simple_model_forward_jit(x, w1, b1, w2, b2))
    assert out.shape == (B, OUT_DIM)

    ref_bf16 = _reference_bf16(x, w1, b1, w2, b2)
    ref_f32 = jnp.maximum(x @ w1 + b1, 0.0) @ w2 + b2
    assert jnp.allclose(out, ref_bf16, atol=1e-2, rtol=1e-2)
    assert jnp.allclose(out, ref_f32, atol=6e-2, rtol=6e-2)

    # Non-multiple batch: exercises batch tiling, padding, and tile slicing.
    B2 = 600
    x2 = jax.random.normal(kx2, (B2, IN_DIM), jnp.float32)
    out2 = jax.block_until_ready(simple_model_forward_jit(x2, w1, b1, w2, b2))
    assert out2.shape == (B2, OUT_DIM)
    ref2_bf16 = _reference_bf16(x2, w1, b1, w2, b2)
    assert jnp.allclose(out2, ref2_bf16, atol=1e-2, rtol=1e-2)

    print("KERNEL_OK")
</pallas_src>

<mosaic_0001>
module attributes {stable_mosaic.version = 11 : i64} {
  func.func @mlp_kernel(%arg0: i32, %arg1: memref<8x1024xf32, #tpu.memory_space<vmem>>, %arg2: memref<1024x512xbf16, #tpu.memory_space<vmem>>, %arg3: memref<1x512xf32, #tpu.memory_space<vmem>>, %arg4: memref<512x128xbf16, #tpu.memory_space<vmem>>, %arg5: memref<1x128xf32, #tpu.memory_space<vmem>>, %arg6: memref<8x128xf32, #tpu.memory_space<vmem>>) attributes {dimension_semantics = [#tpu.dimension_semantics<parallel>], iteration_bounds = array<i64: 1>, scalar_prefetch = 0 : i64, scratch_operands = 0 : i64, tpu.core_type = #tpu.core_type<tc>, window_params = [{transform_indices = @transform_0, window_bounds = array<i64: 8, 1024>}, {pipeline_mode = #tpu.pipeline_mode<synchronous>, transform_indices = @transform_1, window_bounds = array<i64: 1024, 512>}, {pipeline_mode = #tpu.pipeline_mode<synchronous>, transform_indices = @transform_2, window_bounds = array<i64: 1, 512>}, {pipeline_mode = #tpu.pipeline_mode<synchronous>, transform_indices = @transform_3, window_bounds = array<i64: 512, 128>}, {pipeline_mode = #tpu.pipeline_mode<synchronous>, transform_indices = @transform_4, window_bounds = array<i64: 1, 128>}, {transform_indices = @transform_5, window_bounds = array<i64: 8, 128>}]} {
    %c0 = arith.constant 0 : index
    %c0_0 = arith.constant 0 : index
    %0 = vector.load %arg1[%c0, %c0_0] : memref<8x1024xf32, #tpu.memory_space<vmem>>, vector<8x1024xf32>
    %1 = arith.truncf %0 : vector<8x1024xf32> to vector<8x1024xbf16>
    %c0_1 = arith.constant 0 : index
    %c0_2 = arith.constant 0 : index
    %2 = vector.load %arg2[%c0_1, %c0_2] : memref<1024x512xbf16, #tpu.memory_space<vmem>>, vector<1024x512xbf16>
    %cst = arith.constant dense<0.000000e+00> : vector<8x512xf32>
    %3 = tpu.matmul %1, %2, %cst {dimension_numbers = #tpu.dot_dimension_numbers<[1], [0], [0], [1], [0, 0, 1, 1], [], []>} : vector<8x1024xbf16>, vector<1024x512xbf16>, vector<8x512xf32> -> vector<8x512xf32>
    %c0_3 = arith.constant 0 : index
    %c0_4 = arith.constant 0 : index
    %4 = vector.load %arg3[%c0_3, %c0_4] : memref<1x512xf32, #tpu.memory_space<vmem>>, vector<1x512xf32>
    %5 = vector.broadcast %4 : vector<1x512xf32> to vector<8x512xf32>
    %6 = arith.addf %3, %5 : vector<8x512xf32>
    %cst_5 = arith.constant 0.000000e+00 : f32
    %7 = vector.broadcast %cst_5 : f32 to vector<8x512xf32>
    %8 = arith.maximumf %6, %7 : vector<8x512xf32>
    %9 = arith.truncf %8 : vector<8x512xf32> to vector<8x512xbf16>
    %c0_6 = arith.constant 0 : index
    %c0_7 = arith.constant 0 : index
    %10 = vector.load %arg4[%c0_6, %c0_7] : memref<512x128xbf16, #tpu.memory_space<vmem>>, vector<512x128xbf16>
    %cst_8 = arith.constant dense<0.000000e+00> : vector<8x128xf32>
    %11 = tpu.matmul %9, %10, %cst_8 {dimension_numbers = #tpu.dot_dimension_numbers<[1], [0], [0], [1], [0, 0, 1, 1], [], []>} : vector<8x512xbf16>, vector<512x128xbf16>, vector<8x128xf32> -> vector<8x128xf32>
    %c0_9 = arith.constant 0 : index
    %c0_10 = arith.constant 0 : index
    %12 = vector.load %arg5[%c0_9, %c0_10] : memref<1x128xf32, #tpu.memory_space<vmem>>, vector<1x128xf32>
    %13 = vector.broadcast %12 : vector<1x128xf32> to vector<8x128xf32>
    %14 = arith.addf %11, %13 : vector<8x128xf32>
    %c0_11 = arith.constant 0 : index
    %c0_12 = arith.constant 0 : index
    %15 = vector.load %arg6[%c0_11, %c0_12] : memref<8x128xf32, #tpu.memory_space<vmem>>, vector<8x128xf32>
    tpu.vector_store %arg6[%c0_11, %c0_12], %14 {strides = array<i32>} : memref<8x128xf32, #tpu.memory_space<vmem>>, vector<8x128xf32>,
    return
  }
  func.func @transform_0(%arg0: i32) -> (i32, i32) {
    %c0_i32 = arith.constant 0 : i32
    %c0_i32_0 = arith.constant 0 : i32
    return %arg0, %c0_i32 : i32, i32
  }
  func.func @transform_1(%arg0: i32) -> (i32, i32) {
    %c0_i32 = arith.constant 0 : i32
    %c0_i32_0 = arith.constant 0 : i32
    %c0_i32_1 = arith.constant 0 : i32
    return %c0_i32, %c0_i32_0 : i32, i32
  }
  func.func @transform_2(%arg0: i32) -> (i32, i32) {
    %c0_i32 = arith.constant 0 : i32
    %c0_i32_0 = arith.constant 0 : i32
    %c0_i32_1 = arith.constant 0 : i32
    return %c0_i32, %c0_i32_0 : i32, i32
  }
  func.func @transform_3(%arg0: i32) -> (i32, i32) {
    %c0_i32 = arith.constant 0 : i32
    %c0_i32_0 = arith.constant 0 : i32
    %c0_i32_1 = arith.constant 0 : i32
    return %c0_i32, %c0_i32_0 : i32, i32
  }
  func.func @transform_4(%arg0: i32) -> (i32, i32) {
    %c0_i32 = arith.constant 0 : i32
    %c0_i32_0 = arith.constant 0 : i32
    %c0_i32_1 = arith.constant 0 : i32
    return %c0_i32, %c0_i32_0 : i32, i32
  }
  func.func @transform_5(%arg0: i32) -> (i32, i32) {
    %c0_i32 = arith.constant 0 : i32
    %c0_i32_0 = arith.constant 0 : i32
    return %arg0, %c0_i32 : i32, i32
  }
}

</mosaic_0001>

<llo_original>
// kernel: simple_model_forward.1
$region0: #{simple_model_forward.1}
  #allocation0 [shape = 'u32[]', space=smem, size = 0x4, offset = 0x4, fixed_abs, tag = 'smem constant byte address 0x4 - core index']
  #allocation1 [shape = 'u32[144,128]{1,0:T(1,128)}', space=vmem, size = 0x12000, scoped, tag = 'internal scratch']
  %s0 = inlined_call_operand.vmem [shape: f32[8,1024], index: 0, kind: input, shape index: {}]
  %s1 = inlined_call_operand.vmem [shape: bf16[1024,512], index: 1, kind: input, shape index: {}]
  %s2 = inlined_call_operand.vmem [shape: f32[1,512], index: 2, kind: input, shape index: {}]
  %s3 = inlined_call_operand.vmem [shape: bf16[512,128], index: 3, kind: input, shape index: {}]
  %s4 = inlined_call_operand.vmem [shape: f32[1,128], index: 4, kind: input, shape index: {}]
  %s5 = inlined_call_operand.hbm [shape: f32[8,128], index: 5, kind: output, shape index: {}]
  %s6 = sld [smem:[#allocation0]]
  $region30: #{simple_model_forward.1} parent=0
    _
  %s8 = ssub.s32 1, %s6
  %s9 = scalar_select 0, %s8, %s6
  $region1: #{simple_model_forward.1} parent=0
    #allocation2 [shape = 'u8[4096]{0}', space=vmem, size = 0x1000, scoped, tag = 'output window, operand 0, single buffered']
    #allocation3 [shape = 's32[1]{0}', space=sflag, size = 0x4, scoped, tag = 'scoped memory for simple_model_forward.1']
    %10 = vsyncpa [#allocation3], 0
    // Predicated region
    $region2: #{simple_model_forward.1} parent=1 // pred_check
      _
    $region3: #{simple_model_forward.1} parent=1 // pred_check_branch
      %12 = sbr.rel (0) target = $region5
    $region4: #{simple_model_forward.1} parent=1 // pred_region
      _
    $region5: #{simple_model_forward.1} parent=1 // pred_fallthru
      _
    // Predicated region
    $region6: #{simple_model_forward.1} parent=1 // pred_check
      _
    $region7: #{simple_model_forward.1} parent=1 // pred_check_branch
      %14 = sbr.rel (0) target = $region9
    $region8: #{simple_model_forward.1} parent=1 // pred_region
      _
    $region9: #{simple_model_forward.1} parent=1 // pred_fallthru
      _
    // Predicated region
    $region10: #{simple_model_forward.1} parent=1 // pred_check
      _
    $region11: #{simple_model_forward.1} parent=1 // pred_check_branch
      %16 = sbr.rel (0) target = $region13
    $region12: #{simple_model_forward.1} parent=1 // pred_region
      _
    $region13: #{simple_model_forward.1} parent=1 // pred_fallthru
      _
    // Predicated region
    $region14: #{simple_model_forward.1} parent=1 // pred_check
      _
    $region15: #{simple_model_forward.1} parent=1 // pred_check_branch
      %18 = sbr.rel (0) target = $region17
    $region16: #{simple_model_forward.1} parent=1 // pred_region
      _
    $region17: #{simple_model_forward.1} parent=1 // pred_fallthru
      _
    // Predicated region
    $region18: #{simple_model_forward.1} parent=1 // pred_check
      _
    $region19: #{simple_model_forward.1} parent=1 // pred_check_branch
      %20 = sbr.rel (0) target = $region21
    $region20: #{simple_model_forward.1} parent=1 // pred_region
      _
    $region21: #{simple_model_forward.1} parent=1 // pred_fallthru
      _
    %v22 = vld [vmem:[%s0] sm:$0xff]
    %v23 = vld [vmem:[%s0 + $0x8] sm:$0xff]
    %v24 = vld [vmem:[%s0 + $0x10] sm:$0xff]
    %v25 = vld [vmem:[%s0 + $0x18] sm:$0xff]
    %v26 = vld [vmem:[%s0 + $0x20] sm:$0xff]
    %v27 = vld [vmem:[%s0 + $0x28] sm:$0xff]
    %v28 = vld [vmem:[%s0 + $0x30] sm:$0xff]
    %v29 = vld [vmem:[%s0 + $0x38] sm:$0xff]
    %v30 = vpack.c.bf16 %v22, %v22
    %v31 = vpack.c.bf16 %v23, %v23
    %v32 = vpack.c.bf16 %v24, %v24
    %v33 = vpack.c.bf16 %v25, %v25
    %v34 = vpack.c.bf16 %v26, %v26
    %v35 = vpack.c.bf16 %v27, %v27
    %v36 = vpack.c.bf16 %v28, %v28
    %v37 = vpack.c.bf16 %v29, %v29
    %v38 = vld [vmem:[%s1] sm:$0xff]
    %v39 = vld [vmem:[%s1 + $0x8] sm:$0xff]
    %v40 = vld [vmem:[%s1 + $0x10] sm:$0xff]
    %v41 = vld [vmem:[%s1 + $0x18] sm:$0xff]
    %v42 = vld [vmem:[%s1 + $0x20] sm:$0xff]
    %v43 = vld [vmem:[%s1 + $0x28] sm:$0xff]
    %v44 = vld [vmem:[%s1 + $0x30] sm:$0xff]
    %v45 = vld [vmem:[%s1 + $0x38] sm:$0xff]
    %v46 = vld [vmem:[%s1 + $0x40] sm:$0xff]
    %v47 = vld [vmem:[%s1 + $0x48] sm:$0xff]
    %v48 = vld [vmem:[%s1 + $0x50] sm:$0xff]
    %v49 = vld [vmem:[%s1 + $0x58] sm:$0xff]
    %v50 = vld [vmem:[%s1 + $0x60] sm:$0xff]
    %v51 = vld [vmem:[%s1 + $0x68] sm:$0xff]
    %v52 = vld [vmem:[%s1 + $0x70] sm:$0xff]
    %v53 = vld [vmem:[%s1 + $0x78] sm:$0xff]
    %v54 = vld [vmem:[%s1 + $0x80] sm:$0xff]
    %v55 = vld [vmem:[%s1 + $0x88] sm:$0xff]
    %v56 = vld [vmem:[%s1 + $0x90] sm:$0xff]
    %v57 = vld [vmem:[%s1 + $0x98] sm:$0xff]
    %v58 = vld [vmem:[%s1 + $0xa0] sm:$0xff]
    %v59 = vld [vmem:[%s1 + $0xa8] sm:$0xff]
    %v60 = vld [vmem:[%s1 + $0xb0] sm:$0xff]
    %v61 = vld [vmem:[%s1 + $0xb8] sm:$0xff]
    %v62 = vld [vmem:[%s1 + $0xc0] sm:$0xff]
    %v63 = vld [vmem:[%s1 + $0xc8] sm:$0xff]
    %v64 = vld [vmem:[%s1 + $0xd0] sm:$0xff]
    %v65 = vld [vmem:[%s1 + $0xd8] sm:$0xff]
    %v66 = vld [vmem:[%s1 + $0xe0] sm:$0xff]
    %v67 = vld [vmem:[%s1 + $0xe8] sm:$0xff]
    %v68 = vld [vmem:[%s1 + $0xf0] sm:$0xff]
    %v69 = vld [vmem:[%s1 + $0xf8] sm:$0xff]
    %v70 = vld [vmem:[%s1 + $0x100] sm:$0xff]
    %v71 = vld [vmem:[%s1 + $0x108] sm:$0xff]
    %v72 = vld [vmem:[%s1 + $0x110] sm:$0xff]
    %v73 = vld [vmem:[%s1 + $0x118] sm:$0xff]
    %v74 = vld [vmem:[%s1 + $0x120] sm:$0xff]
    %v75 = vld [vmem:[%s1 + $0x128] sm:$0xff]
    %v76 = vld [vmem:[%s1 + $0x130] sm:$0xff]
    %v77 = vld [vmem:[%s1 + $0x138] sm:$0xff]
    %v78 = vld [vmem:[%s1 + $0x140] sm:$0xff]
    %v79 = vld [vmem:[%s1 + $0x148] sm:$0xff]
    %v80 = vld [vmem:[%s1 + $0x150] sm:$0xff]
    %v81 = vld [vmem:[%s1 + $0x158] sm:$0xff]
    %v82 = vld [vmem:[%s1 + $0x160] sm:$0xff]
    %v83 = vld [vmem:[%s1 + $0x168] sm:$0xff]
    %v84 = vld [vmem:[%s1 + $0x170] sm:$0xff]
    %v85 = vld [vmem:[%s1 + $0x178] sm:$0xff]
    %v86 = vld [vmem:[%s1 + $0x180] sm:$0xff]
    %v87 = vld [vmem:[%s1 + $0x188] sm:$0xff]
    %v88 = vld [vmem:[%s1 + $0x190] sm:$0xff]
    %v89 = vld [vmem:[%s1 + $0x198] sm:$0xff]
    %v90 = vld [vmem:[%s1 + $0x1a0] sm:$0xff]
    %v91 = vld [vmem:[%s1 + $0x1a8] sm:$0xff]
    %v92 = vld [vmem:[%s1 + $0x1b0] sm:$0xff]
    %v93 = vld [vmem:[%s1 + $0x1b8] sm:$0xff]
    %v94 = vld [vmem:[%s1 + $0x1c0] sm:$0xff]
    %v95 = vld [vmem:[%s1 + $0x1c8] sm:$0xff]
    %v96 = vld [vmem:[%s1 + $0x1d0] sm:$0xff]
    %v97 = vld [vmem:[%s1 + $0x1d8] sm:$0xff]
    %v98 = vld [vmem:[%s1 + $0x1e0] sm:$0xff]
    %v99 = vld [vmem:[%s1 + $0x1e8] sm:$0xff]
    %v100 = vld [vmem:[%s1 + $0x1f0] sm:$0xff]
    %v101 = vld [vmem:[%s1 + $0x1f8] sm:$0xff]
    %v102 = vld [vmem:[%s1 + $0x200] sm:$0xff]
    %v103 = vld [vmem:[%s1 + $0x208] sm:$0xff]
    %v104 = vld [vmem:[%s1 + $0x210] sm:$0xff]
    %v105 = vld [vmem:[%s1 + $0x218] sm:$0xff]
    %v106 = vld [vmem:[%s1 + $0x220] sm:$0xff]
    %v107 = vld [vmem:[%s1 + $0x228] sm:$0xff]
    %v108 = vld [vmem:[%s1 + $0x230] sm:$0xff]
    %v109 = vld [vmem:[%s1 + $0x238] sm:$0xff]
    %v110 = vld [vmem:[%s1 + $0x240] sm:$0xff]
    %v111 = vld [vmem:[%s1 + $0x248] sm:$0xff]
    %v112 = vld [vmem:[%s1 + $0x250] sm:$0xff]
    %v113 = vld [vmem:[%s1 + $0x258] sm:$0xff]
    %v114 = vld [vmem:[%s1 + $0x260] sm:$0xff]
    %v115 = vld [vmem:[%s1 + $0x268] sm:$0xff]
    %v116 = vld [vmem:[%s1 + $0x270] sm:$0xff]
    %v117 = vld [vmem:[%s1 + $0x278] sm:$0xff]
    %v118 = vld [vmem:[%s1 + $0x280] sm:$0xff]
    %v119 = vld [vmem:[%s1 + $0x288] sm:$0xff]
    %v120 = vld [vmem:[%s1 + $0x290] sm:$0xff]
    %v121 = vld [vmem:[%s1 + $0x298] sm:$0xff]
    %v122 = vld [vmem:[%s1 + $0x2a0] sm:$0xff]
    %v123 = vld [vmem:[%s1 + $0x2a8] sm:$0xff]
    %v124 = vld [vmem:[%s1 + $0x2b0] sm:$0xff]
    %v125 = vld [vmem:[%s1 + $0x2b8] sm:$0xff]
    %v126 = vld [vmem:[%s1 + $0x2c0] sm:$0xff]
    %v127 = vld [vmem:[%s1 + $0x2c8] sm:$0xff]
    %v128 = vld [vmem:[%s1 + $0x2d0] sm:$0xff]
    %v129 = vld [vmem:[%s1 + $0x2d8] sm:$0xff]
    %v130 = vld [vmem:[%s1 + $0x2e0] sm:$0xff]
    %v131 = vld [vmem:[%s1 + $0x2e8] sm:$0xff]
    %v132 = vld [vmem:[%s1 + $0x2f0] sm:$0xff]
    %v133 = vld [vmem:[%s1 + $0x2f8] sm:$0xff]
    %v134 = vld [vmem:[%s1 + $0x300] sm:$0xff]
    %v135 = vld [vmem:[%s1 + $0x308] sm:$0xff]
    %v136 = vld [vmem:[%s1 + $0x310] sm:$0xff]
    %v137 = vld [vmem:[%s1 + $0x318] sm:$0xff]
    %v138 = vld [vmem:[%s1 + $0x320] sm:$0xff]
    %v139 = vld [vmem:[%s1 + $0x328] sm:$0xff]
    %v140 = vld [vmem:[%s1 + $0x330] sm:$0xff]
    %v141 = vld [vmem:[%s1 + $0x338] sm:$0xff]
    %v142 = vld [vmem:[%s1 + $0x340] sm:$0xff]
    %v143 = vld [vmem:[%s1 + $0x348] sm:$0xff]
    %v144 = vld [vmem:[%s1 + $0x350] sm:$0xff]
    %v145 = vld [vmem:[%s1 + $0x358] sm:$0xff]
    %v146 = vld [vmem:[%s1 + $0x360] sm:$0xff]
    %v147 = vld [vmem:[%s1 + $0x368] sm:$0xff]
    %v148 = vld [vmem:[%s1 + $0x370] sm:$0xff]
    %v149 = vld [vmem:[%s1 + $0x378] sm:$0xff]
    %v150 = vld [vmem:[%s1 + $0x380] sm:$0xff]
    %v151 = vld [vmem:[%s1 + $0x388] sm:$0xff]
    %v152 = vld [vmem:[%s1 + $0x390] sm:$0xff]
    %v153 = vld [vmem:[%s1 + $0x398] sm:$0xff]
    %v154 = vld [vmem:[%s1 + $0x3a0] sm:$0xff]
    %v155 = vld [vmem:[%s1 + $0x3a8] sm:$0xff]
    %v156 = vld [vmem:[%s1 + $0x3b0] sm:$0xff]
    %v157 = vld [vmem:[%s1 + $0x3b8] sm:$0xff]
    %v158 = vld [vmem:[%s1 + $0x3c0] sm:$0xff]
    %v159 = vld [vmem:[%s1 + $0x3c8] sm:$0xff]
    %v160 = vld [vmem:[%s1 + $0x3d0] sm:$0xff]
    %v161 = vld [vmem:[%s1 + $0x3d8] sm:$0xff]
    %v162 = vld [vmem:[%s1 + $0x3e0] sm:$0xff]
    %v163 = vld [vmem:[%s1 + $0x3e8] sm:$0xff]
    %v164 = vld [vmem:[%s1 + $0x3f0] sm:$0xff]
    %v165 = vld [vmem:[%s1 + $0x3f8] sm:$0xff]
    %v166 = vld [vmem:[%s1 + $0x400] sm:$0xff]
    %v167 = vld [vmem:[%s1 + $0x408] sm:$0xff]
    %v168 = vld [vmem:[%s1 + $0x410] sm:$0xff]
    %v169 = vld [vmem:[%s1 + $0x418] sm:$0xff]
    %v170 = vld [vmem:[%s1 + $0x420] sm:$0xff]
    %v171 = vld [vmem:[%s1 + $0x428] sm:$0xff]
    %v172 = vld [vmem:[%s1 + $0x430] sm:$0xff]
    %v173 = vld [vmem:[%s1 + $0x438] sm:$0xff]
    %v174 = vld [vmem:[%s1 + $0x440] sm:$0xff]
    %v175 = vld [vmem:[%s1 + $0x448] sm:$0xff]
    %v176 = vld [vmem:[%s1 + $0x450] sm:$0xff]
    %v177 = vld [vmem:[%s1 + $0x458] sm:$0xff]
    %v178 = vld [vmem:[%s1 + $0x460] sm:$0xff]
    %v179 = vld [vmem:[%s1 + $0x468] sm:$0xff]
    %v180 = vld [vmem:[%s1 + $0x470] sm:$0xff]
    %v181 = vld [vmem:[%s1 + $0x478] sm:$0xff]
    %v182 = vld [vmem:[%s1 + $0x480] sm:$0xff]
    %v183 = vld [vmem:[%s1 + $0x488] sm:$0xff]
    %v184 = vld [vmem:[%s1 + $0x490] sm:$0xff]
    %v185 = vld [vmem:[%s1 + $0x498] sm:$0xff]
    %v186 = vld [vmem:[%s1 + $0x4a0] sm:$0xff]
    %v187 = vld [vmem:[%s1 + $0x4a8] sm:$0xff]
    %v188 = vld [vmem:[%s1 + $0x4b0] sm:$0xff]
    %v189 = vld [vmem:[%s1 + $0x4b8] sm:$0xff]
    %v190 = vld [vmem:[%s1 + $0x4c0] sm:$0xff]
    %v191 = vld [vmem:[%s1 + $0x4c8] sm:$0xff]
    %v192 = vld [vmem:[%s1 + $0x4d0] sm:$0xff]
    %v193 = vld [vmem:[%s1 + $0x4d8] sm:$0xff]
    %v194 = vld [vmem:[%s1 + $0x4e0] sm:$0xff]
    %v195 = vld [vmem:[%s1 + $0x4e8] sm:$0xff]
    %v196 = vld [vmem:[%s1 + $0x4f0] sm:$0xff]
    %v197 = vld [vmem:[%s1 + $0x4f8] sm:$0xff]
    %v198 = vld [vmem:[%s1 + $0x500] sm:$0xff]
    %v199 = vld [vmem:[%s1 + $0x508] sm:$0xff]
    %v200 = vld [vmem:[%s1 + $0x510] sm:$0xff]
    %v201 = vld [vmem:[%s1 + $0x518] sm:$0xff]
    %v202 = vld [vmem:[%s1 + $0x520] sm:$0xff]
    %v203 = vld [vmem:[%s1 + $0x528] sm:$0xff]
    %v204 = vld [vmem:[%s1 + $0x530] sm:$0xff]
    %v205 = vld [vmem:[%s1 + $0x538] sm:$0xff]
    %v206 = vld [vmem:[%s1 + $0x540] sm:$0xff]
    %v207 = vld [vmem:[%s1 + $0x548] sm:$0xff]
    %v208 = vld [vmem:[%s1 + $0x550] sm:$0xff]
    %v209 = vld [vmem:[%s1 + $0x558] sm:$0xff]
    %v210 = vld [vmem:[%s1 + $0x560] sm:$0xff]
    %v211 = vld [vmem:[%s1 + $0x568] sm:$0xff]
    %v212 = vld [vmem:[%s1 + $0x570] sm:$0xff]
    %v213 = vld [vmem:[%s1 + $0x578] sm:$0xff]
    %v214 = vld [vmem:[%s1 + $0x580] sm:$0xff]
    %v215 = vld [vmem:[%s1 + $0x588] sm:$0xff]
    %v216 = vld [vmem:[%s1 + $0x590] sm:$0xff]
    %v217 = vld [vmem:[%s1 + $0x598] sm:$0xff]
    %v218 = vld [vmem:[%s1 + $0x5a0] sm:$0xff]
    %v219 = vld [vmem:[%s1 + $0x5a8] sm:$0xff]
    %v220 = vld [vmem:[%s1 + $0x5b0] sm:$0xff]
    %v221 = vld [vmem:[%s1 + $0x5b8] sm:$0xff]
    %v222 = vld [vmem:[%s1 + $0x5c0] sm:$0xff]
    %v223 = vld [vmem:[%s1 + $0x5c8] sm:$0xff]
    %v224 = vld [vmem:[%s1 + $0x5d0] sm:$0xff]
    %v225 = vld [vmem:[%s1 + $0x5d8] sm:$0xff]
    %v226 = vld [vmem:[%s1 + $0x5e0] sm:$0xff]
    %v227 = vld [vmem:[%s1 + $0x5e8] sm:$0xff]
    %v228 = vld [vmem:[%s1 + $0x5f0] sm:$0xff]
    %v229 = vld [vmem:[%s1 + $0x5f8] sm:$0xff]
    %v230 = vld [vmem:[%s1 + $0x600] sm:$0xff]
    %v231 = vld [vmem:[%s1 + $0x608] sm:$0xff]
    %v232 = vld [vmem:[%s1 + $0x610] sm:$0xff]
    %v233 = vld [vmem:[%s1 + $0x618] sm:$0xff]
    %v234 = vld [vmem:[%s1 + $0x620] sm:$0xff]
    %v235 = vld [vmem:[%s1 + $0x628] sm:$0xff]
    %v236 = vld [vmem:[%s1 + $0x630] sm:$0xff]
    %v237 = vld [vmem:[%s1 + $0x638] sm:$0xff]
    %v238 = vld [vmem:[%s1 + $0x640] sm:$0xff]
    %v239 = vld [vmem:[%s1 + $0x648] sm:$0xff]
    %v240 = vld [vmem:[%s1 + $0x650] sm:$0xff]
    %v241 = vld [vmem:[%s1 + $0x658] sm:$0xff]
    %v242 = vld [vmem:[%s1 + $0x660] sm:$0xff]
    %v243 = vld [vmem:[%s1 + $0x668] sm:$0xff]
    %v244 = vld [vmem:[%s1 + $0x670] sm:$0xff]
    %v245 = vld [vmem:[%s1 + $0x678] sm:$0xff]
    %v246 = vld [vmem:[%s1 + $0x680] sm:$0xff]
    %v247 = vld [vmem:[%s1 + $0x688] sm:$0xff]
    %v248 = vld [vmem:[%s1 + $0x690] sm:$0xff]
    %v249 = vld [vmem:[%s1 + $0x698] sm:$0xff]
    %v250 = vld [vmem:[%s1 + $0x6a0] sm:$0xff]
    %v251 = vld [vmem:[%s1 + $0x6a8] sm:$0xff]
    %v252 = vld [vmem:[%s1 + $0x6b0] sm:$0xff]
    %v253 = vld [vmem:[%s1 + $0x6b8] sm:$0xff]
    %v254 = vld [vmem:[%s1 + $0x6c0] sm:$0xff]
    %v255 = vld [vmem:[%s1 + $0x6c8] sm:$0xff]
    %v256 = vld [vmem:[%s1 + $0x6d0] sm:$0xff]
    %v257 = vld [vmem:[%s1 + $0x6d8] sm:$0xff]
    %v258 = vld [vmem:[%s1 + $0x6e0] sm:$0xff]
    %v259 = vld [vmem:[%s1 + $0x6e8] sm:$0xff]
    %v260 = vld [vmem:[%s1 + $0x6f0] sm:$0xff]
    %v261 = vld [vmem:[%s1 + $0x6f8] sm:$0xff]
    %v262 = vld [vmem:[%s1 + $0x700] sm:$0xff]
    %v263 = vld [vmem:[%s1 + $0x708] sm:$0xff]
    %v264 = vld [vmem:[%s1 + $0x710] sm:$0xff]
    %v265 = vld [vmem:[%s1 + $0x718] sm:$0xff]
    %v266 = vld [vmem:[%s1 + $0x720] sm:$0xff]
    %v267 = vld [vmem:[%s1 + $0x728] sm:$0xff]
    %v268 = vld [vmem:[%s1 + $0x730] sm:$0xff]
    %v269 = vld [vmem:[%s1 + $0x738] sm:$0xff]
    %v270 = vld [vmem:[%s1 + $0x740] sm:$0xff]
    %v271 = vld [vmem:[%s1 + $0x748] sm:$0xff]
    %v272 = vld [vmem:[%s1 + $0x750] sm:$0xff]
    %v273 = vld [vmem:[%s1 + $0x758] sm:$0xff]
    %v274 = vld [vmem:[%s1 + $0x760] sm:$0xff]
    %v275 = vld [vmem:[%s1 + $0x768] sm:$0xff]
    %v276 = vld [vmem:[%s1 + $0x770] sm:$0xff]
    %v277 = vld [vmem:[%s1 + $0x778] sm:$0xff]
    %v278 = vld [vmem:[%s1 + $0x780] sm:$0xff]
    %v279 = vld [vmem:[%s1 + $0x788] sm:$0xff]
    %v280 = vld [vmem:[%s1 + $0x790] sm:$0xff]
    %v281 = vld [vmem:[%s1 + $0x798] sm:$0xff]
    %v282 = vld [vmem:[%s1 + $0x7a0] sm:$0xff]
    %v283 = vld [vmem:[%s1 + $0x7a8] sm:$0xff]
    %v284 = vld [vmem:[%s1 + $0x7b0] sm:$0xff]
    %v285 = vld [vmem:[%s1 + $0x7b8] sm:$0xff]
    %v286 = vld [vmem:[%s1 + $0x7c0] sm:$0xff]
    %v287 = vld [vmem:[%s1 + $0x7c8] sm:$0xff]
    %v288 = vld [vmem:[%s1 + $0x7d0] sm:$0xff]
    %v289 = vld [vmem:[%s1 + $0x7d8] sm:$0xff]
    %v290 = vld [vmem:[%s1 + $0x7e0] sm:$0xff]
    %v291 = vld [vmem:[%s1 + $0x7e8] sm:$0xff]
    %v292 = vld [vmem:[%s1 + $0x7f0] sm:$0xff]
    %v293 = vld [vmem:[%s1 + $0x7f8] sm:$0xff]
    %v294 = vld [vmem:[%s2] sm:$0xf]
    %v296 = vlaneseq
    %v297 = vshrl.u32 %v296, 7
    %v298 = vsub.s32 0, %v297
    %v299 = vrot.slane %v294, %v298
    %v300 = vlaneseq
    %v301 = vshrl.u32 %v300, 7
    %v302 = vsub.s32 1, %v301
    %v303 = vrot.slane %v294, %v302
    %v304 = vlaneseq
    %v305 = vshrl.u32 %v304, 7
    %v306 = vsub.s32 2, %v305
    %v307 = vrot.slane %v294, %v306
    %v308 = vlaneseq
    %v309 = vshrl.u32 %v308, 7
    %v310 = vsub.s32 3, %v309
    %v311 = vrot.slane %v294, %v310
    %v572 = vunpack.c.l.b16 %v38
    %v573 = vunpack.c.h.b16 %v38
    %v574 = vunpack.c.l.b16 %v39
    %v575 = vunpack.c.h.b16 %v39
    %v576 = vunpack.c.l.b16 %v40
    %v577 = vunpack.c.h.b16 %v40
    %v578 = vunpack.c.l.b16 %v41
    %v579 = vunpack.c.h.b16 %v41
    %v580 = vunpack.c.l.b16 %v42
    %v581 = vunpack.c.h.b16 %v42
    %v582 = vunpack.c.l.b16 %v43
    %v583 = vunpack.c.h.b16 %v43
    %v584 = vunpack.c.l.b16 %v44
    %v585 = vunpack.c.h.b16 %v44
    %v586 = vunpack.c.l.b16 %v45
    %v587 = vunpack.c.h.b16 %v45
    %v588 = vunpack.c.l.b16 %v46
    %v589 = vunpack.c.h.b16 %v46
    %v590 = vunpack.c.l.b16 %v47
    %v591 = vunpack.c.h.b16 %v47
    %v592 = vunpack.c.l.b16 %v48
    %v593 = vunpack.c.h.b16 %v48
    %v594 = vunpack.c.l.b16 %v49
    %v595 = vunpack.c.h.b16 %v49
    %v596 = vunpack.c.l.b16 %v50
    %v597 = vunpack.c.h.b16 %v50
    %v598 = vunpack.c.l.b16 %v51
    %v599 = vunpack.c.h.b16 %v51
    %v600 = vunpack.c.l.b16 %v52
    %v601 = vunpack.c.h.b16 %v52
    %v602 = vunpack.c.l.b16 %v53
    %v603 = vunpack.c.h.b16 %v53
    %v604 = vunpack.c.l.b16 %v54
    %v605 = vunpack.c.h.b16 %v54
    %v606 = vunpack.c.l.b16 %v55
    %v607 = vunpack.c.h.b16 %v55
    %v608 = vunpack.c.l.b16 %v56
    %v609 = vunpack.c.h.b16 %v56
    %v610 = vunpack.c.l.b16 %v57
    %v611 = vunpack.c.h.b16 %v57
    %v612 = vunpack.c.l.b16 %v58
    %v613 = vunpack.c.h.b16 %v58
    %v614 = vunpack.c.l.b16 %v59
    %v615 = vunpack.c.h.b16 %v59
    %v616 = vunpack.c.l.b16 %v60
    %v617 = vunpack.c.h.b16 %v60
    %v618 = vunpack.c.l.b16 %v61
    %v619 = vunpack.c.h.b16 %v61
    %v620 = vunpack.c.l.b16 %v62
    %v621 = vunpack.c.h.b16 %v62
    %v622 = vunpack.c.l.b16 %v63
    %v623 = vunpack.c.h.b16 %v63
    %v624 = vunpack.c.l.b16 %v64
    %v625 = vunpack.c.h.b16 %v64
    %v626 = vunpack.c.l.b16 %v65
    %v627 = vunpack.c.h.b16 %v65
    %v628 = vunpack.c.l.b16 %v66
    %v629 = vunpack.c.h.b16 %v66
    %v630 = vunpack.c.l.b16 %v67
    %v631 = vunpack.c.h.b16 %v67
    %v632 = vunpack.c.l.b16 %v68
    %v633 = vunpack.c.h.b16 %v68
    %v634 = vunpack.c.l.b16 %v69
    %v635 = vunpack.c.h.b16 %v69
    %v636 = vunpack.c.l.b16 %v70
    %v637 = vunpack.c.h.b16 %v70
    %v638 = vunpack.c.l.b16 %v71
    %v639 = vunpack.c.h.b16 %v71
    %v640 = vunpack.c.l.b16 %v72
    %v641 = vunpack.c.h.b16 %v72
    %v642 = vunpack.c.l.b16 %v73
    %v643 = vunpack.c.h.b16 %v73
    %v644 = vunpack.c.l.b16 %v74
    %v645 = vunpack.c.h.b16 %v74
    %v646 = vunpack.c.l.b16 %v75
    %v647 = vunpack.c.h.b16 %v75
    %v648 = vunpack.c.l.b16 %v76
    %v649 = vunpack.c.h.b16 %v76
    %v650 = vunpack.c.l.b16 %v77
    %v651 = vunpack.c.h.b16 %v77
    %v652 = vunpack.c.l.b16 %v78
    %v653 = vunpack.c.h.b16 %v78
    %v654 = vunpack.c.l.b16 %v79
    %v655 = vunpack.c.h.b16 %v79
    %v656 = vunpack.c.l.b16 %v80
    %v657 = vunpack.c.h.b16 %v80
    %v658 = vunpack.c.l.b16 %v81
    %v659 = vunpack.c.h.b16 %v81
    %v660 = vunpack.c.l.b16 %v82
    %v661 = vunpack.c.h.b16 %v82
    %v662 = vunpack.c.l.b16 %v83
    %v663 = vunpack.c.h.b16 %v83
    %v664 = vunpack.c.l.b16 %v84
    %v665 = vunpack.c.h.b16 %v84
    %v666 = vunpack.c.l.b16 %v85
    %v667 = vunpack.c.h.b16 %v85
    %v668 = vunpack.c.l.b16 %v86
    %v669 = vunpack.c.h.b16 %v86
    %v670 = vunpack.c.l.b16 %v87
    %v671 = vunpack.c.h.b16 %v87
    %v672 = vunpack.c.l.b16 %v88
    %v673 = vunpack.c.h.b16 %v88
    %v674 = vunpack.c.l.b16 %v89
    %v675 = vunpack.c.h.b16 %v89
    %v676 = vunpack.c.l.b16 %v90
    %v677 = vunpack.c.h.b16 %v90
    %v678 = vunpack.c.l.b16 %v91
    %v679 = vunpack.c.h.b16 %v91
    %v680 = vunpack.c.l.b16 %v92
    %v681 = vunpack.c.h.b16 %v92
    %v682 = vunpack.c.l.b16 %v93
    %v683 = vunpack.c.h.b16 %v93
    %v684 = vunpack.c.l.b16 %v94
    %v685 = vunpack.c.h.b16 %v94
    %v686 = vunpack.c.l.b16 %v95
    %v687 = vunpack.c.h.b16 %v95
    %v688 = vunpack.c.l.b16 %v96
    %v689 = vunpack.c.h.b16 %v96
    %v690 = vunpack.c.l.b16 %v97
    %v691 = vunpack.c.h.b16 %v97
    %v692 = vunpack.c.l.b16 %v98
    %v693 = vunpack.c.h.b16 %v98
    %v694 = vunpack.c.l.b16 %v99
    %v695 = vunpack.c.h.b16 %v99
    %v696 = vunpack.c.l.b16 %v100
    %v697 = vunpack.c.h.b16 %v100
    %v698 = vunpack.c.l.b16 %v101
    %v699 = vunpack.c.h.b16 %v101
    %v700 = vunpack.c.l.b16 %v102
    %v701 = vunpack.c.h.b16 %v102
    %v702 = vunpack.c.l.b16 %v103
    %v703 = vunpack.c.h.b16 %v103
    %v704 = vunpack.c.l.b16 %v104
    %v705 = vunpack.c.h.b16 %v104
    %v706 = vunpack.c.l.b16 %v105
    %v707 = vunpack.c.h.b16 %v105
    %v708 = vunpack.c.l.b16 %v106
    %v709 = vunpack.c.h.b16 %v106
    %v710 = vunpack.c.l.b16 %v107
    %v711 = vunpack.c.h.b16 %v107
    %v712 = vunpack.c.l.b16 %v108
    %v713 = vunpack.c.h.b16 %v108
    %v714 = vunpack.c.l.b16 %v109
    %v715 = vunpack.c.h.b16 %v109
    %v716 = vunpack.c.l.b16 %v110
    %v717 = vunpack.c.h.b16 %v110
    %v718 = vunpack.c.l.b16 %v111
    %v719 = vunpack.c.h.b16 %v111
    %v720 = vunpack.c.l.b16 %v112
    %v721 = vunpack.c.h.b16 %v112
    %v722 = vunpack.c.l.b16 %v113
    %v723 = vunpack.c.h.b16 %v113
    %v724 = vunpack.c.l.b16 %v114
    %v725 = vunpack.c.h.b16 %v114
    %v726 = vunpack.c.l.b16 %v115
    %v727 = vunpack.c.h.b16 %v115
    %v728 = vunpack.c.l.b16 %v116
    %v729 = vunpack.c.h.b16 %v116
    %v730 = vunpack.c.l.b16 %v117
    %v731 = vunpack.c.h.b16 %v117
    %v732 = vunpack.c.l.b16 %v118
    %v733 = vunpack.c.h.b16 %v118
    %v734 = vunpack.c.l.b16 %v119
    %v735 = vunpack.c.h.b16 %v119
    %v736 = vunpack.c.l.b16 %v120
    %v737 = vunpack.c.h.b16 %v120
    %v738 = vunpack.c.l.b16 %v121
    %v739 = vunpack.c.h.b16 %v121
    %v740 = vunpack.c.l.b16 %v122
    %v741 = vunpack.c.h.b16 %v122
    %v742 = vunpack.c.l.b16 %v123
    %v743 = vunpack.c.h.b16 %v123
    %v744 = vunpack.c.l.b16 %v124
    %v745 = vunpack.c.h.b16 %v124
    %v746 = vunpack.c.l.b16 %v125
    %v747 = vunpack.c.h.b16 %v125
    %v748 = vunpack.c.l.b16 %v126
    %v749 = vunpack.c.h.b16 %v126
    %v750 = vunpack.c.l.b16 %v127
    %v751 = vunpack.c.h.b16 %v127
    %v752 = vunpack.c.l.b16 %v128
    %v753 = vunpack.c.h.b16 %v128
    %v754 = vunpack.c.l.b16 %v129
    %v755 = vunpack.c.h.b16 %v129
    %v756 = vunpack.c.l.b16 %v130
    %v757 = vunpack.c.h.b16 %v130
    %v758 = vunpack.c.l.b16 %v131
    %v759 = vunpack.c.h.b16 %v131
    %v760 = vunpack.c.l.b16 %v132
    %v761 = vunpack.c.h.b16 %v132
    %v762 = vunpack.c.l.b16 %v133
    %v763 = vunpack.c.h.b16 %v133
    %v764 = vunpack.c.l.b16 %v134
    %v765 = vunpack.c.h.b16 %v134
    %v766 = vunpack.c.l.b16 %v135
    %v767 = vunpack.c.h.b16 %v135
    %v768 = vunpack.c.l.b16 %v136
    %v769 = vunpack.c.h.b16 %v136
    %v770 = vunpack.c.l.b16 %v137
    %v771 = vunpack.c.h.b16 %v137
    %v772 = vunpack.c.l.b16 %v138
    %v773 = vunpack.c.h.b16 %v138
    %v774 = vunpack.c.l.b16 %v139
    %v775 = vunpack.c.h.b16 %v139
    %v776 = vunpack.c.l.b16 %v140
    %v777 = vunpack.c.h.b16 %v140
    %v778 = vunpack.c.l.b16 %v141
    %v779 = vunpack.c.h.b16 %v141
    %v780 = vunpack.c.l.b16 %v142
    %v781 = vunpack.c.h.b16 %v142
    %v782 = vunpack.c.l.b16 %v143
    %v783 = vunpack.c.h.b16 %v143
    %v784 = vunpack.c.l.b16 %v144
    %v785 = vunpack.c.h.b16 %v144
    %v786 = vunpack.c.l.b16 %v145
    %v787 = vunpack.c.h.b16 %v145
    %v788 = vunpack.c.l.b16 %v146
    %v789 = vunpack.c.h.b16 %v146
    %v790 = vunpack.c.l.b16 %v147
    %v791 = vunpack.c.h.b16 %v147
    %v792 = vunpack.c.l.b16 %v148
    %v793 = vunpack.c.h.b16 %v148
    %v794 = vunpack.c.l.b16 %v149
    %v795 = vunpack.c.h.b16 %v149
    %v796 = vunpack.c.l.b16 %v150
    %v797 = vunpack.c.h.b16 %v150
    %v798 = vunpack.c.l.b16 %v151
    %v799 = vunpack.c.h.b16 %v151
    %v800 = vunpack.c.l.b16 %v152
    %v801 = vunpack.c.h.b16 %v152
    %v802 = vunpack.c.l.b16 %v153
    %v803 = vunpack.c.h.b16 %v153
    %v804 = vunpack.c.l.b16 %v154
    %v805 = vunpack.c.h.b16 %v154
    %v806 = vunpack.c.l.b16 %v155
    %v807 = vunpack.c.h.b16 %v155
    %v808 = vunpack.c.l.b16 %v156
    %v809 = vunpack.c.h.b16 %v156
    %v810 = vunpack.c.l.b16 %v157
    %v811 = vunpack.c.h.b16 %v157
    %v812 = vunpack.c.l.b16 %v158
    %v813 = vunpack.c.h.b16 %v158
    %v814 = vunpack.c.l.b16 %v159
    %v815 = vunpack.c.h.b16 %v159
    %v816 = vunpack.c.l.b16 %v160
    %v817 = vunpack.c.h.b16 %v160
    %v818 = vunpack.c.l.b16 %v161
    %v819 = vunpack.c.h.b16 %v161
    %v820 = vunpack.c.l.b16 %v162
    %v821 = vunpack.c.h.b16 %v162
    %v822 = vunpack.c.l.b16 %v163
    %v823 = vunpack.c.h.b16 %v163
    %v824 = vunpack.c.l.b16 %v164
    %v825 = vunpack.c.h.b16 %v164
    %v826 = vunpack.c.l.b16 %v165
    %v827 = vunpack.c.h.b16 %v165
    %v828 = vunpack.c.l.b16 %v166
    %v829 = vunpack.c.h.b16 %v166
    %v830 = vunpack.c.l.b16 %v167
    %v831 = vunpack.c.h.b16 %v167
    %v832 = vunpack.c.l.b16 %v168
    %v833 = vunpack.c.h.b16 %v168
    %v834 = vunpack.c.l.b16 %v169
    %v835 = vunpack.c.h.b16 %v169
    %v836 = vunpack.c.l.b16 %v170
    %v837 = vunpack.c.h.b16 %v170
    %v838 = vunpack.c.l.b16 %v171
    %v839 = vunpack.c.h.b16 %v171
    %v840 = vunpack.c.l.b16 %v172
    %v841 = vunpack.c.h.b16 %v172
    %v842 = vunpack.c.l.b16 %v173
    %v843 = vunpack.c.h.b16 %v173
    %v844 = vunpack.c.l.b16 %v174
    %v845 = vunpack.c.h.b16 %v174
    %v846 = vunpack.c.l.b16 %v175
    %v847 = vunpack.c.h.b16 %v175
    %v848 = vunpack.c.l.b16 %v176
    %v849 = vunpack.c.h.b16 %v176
    %v850 = vunpack.c.l.b16 %v177
    %v851 = vunpack.c.h.b16 %v177
    %v852 = vunpack.c.l.b16 %v178
    %v853 = vunpack.c.h.b16 %v178
    %v854 = vunpack.c.l.b16 %v179
    %v855 = vunpack.c.h.b16 %v179
    %v856 = vunpack.c.l.b16 %v180
    %v857 = vunpack.c.h.b16 %v180
    %v858 = vunpack.c.l.b16 %v181
    %v859 = vunpack.c.h.b16 %v181
    %v860 = vunpack.c.l.b16 %v182
    %v861 = vunpack.c.h.b16 %v182
    %v862 = vunpack.c.l.b16 %v183
    %v863 = vunpack.c.h.b16 %v183
    %v864 = vunpack.c.l.b16 %v184
    %v865 = vunpack.c.h.b16 %v184
    %v866 = vunpack.c.l.b16 %v185
    %v867 = vunpack.c.h.b16 %v185
    %v868 = vunpack.c.l.b16 %v186
    %v869 = vunpack.c.h.b16 %v186
    %v870 = vunpack.c.l.b16 %v187
    %v871 = vunpack.c.h.b16 %v187
    %v872 = vunpack.c.l.b16 %v188
    %v873 = vunpack.c.h.b16 %v188
    %v874 = vunpack.c.l.b16 %v189
    %v875 = vunpack.c.h.b16 %v189
    %v876 = vunpack.c.l.b16 %v190
    %v877 = vunpack.c.h.b16 %v190
    %v878 = vunpack.c.l.b16 %v191
    %v879 = vunpack.c.h.b16 %v191
    %v880 = vunpack.c.l.b16 %v192
    %v881 = vunpack.c.h.b16 %v192
    %v882 = vunpack.c.l.b16 %v193
    %v883 = vunpack.c.h.b16 %v193
    %v884 = vunpack.c.l.b16 %v194
    %v885 = vunpack.c.h.b16 %v194
    %v886 = vunpack.c.l.b16 %v195
    %v887 = vunpack.c.h.b16 %v195
    %v888 = vunpack.c.l.b16 %v196
    %v889 = vunpack.c.h.b16 %v196
    %v890 = vunpack.c.l.b16 %v197
    %v891 = vunpack.c.h.b16 %v197
    %v892 = vunpack.c.l.b16 %v198
    %v893 = vunpack.c.h.b16 %v198
    %v894 = vunpack.c.l.b16 %v199
    %v895 = vunpack.c.h.b16 %v199
    %v896 = vunpack.c.l.b16 %v200
    %v897 = vunpack.c.h.b16 %v200
    %v898 = vunpack.c.l.b16 %v201
    %v899 = vunpack.c.h.b16 %v201
    %v900 = vunpack.c.l.b16 %v202
    %v901 = vunpack.c.h.b16 %v202
    %v902 = vunpack.c.l.b16 %v203
    %v903 = vunpack.c.h.b16 %v203
    %v904 = vunpack.c.l.b16 %v204
    %v905 = vunpack.c.h.b16 %v204
    %v906 = vunpack.c.l.b16 %v205
    %v907 = vunpack.c.h.b16 %v205
    %v908 = vunpack.c.l.b16 %v206
    %v909 = vunpack.c.h.b16 %v206
    %v910 = vunpack.c.l.b16 %v207
    %v911 = vunpack.c.h.b16 %v207
    %v912 = vunpack.c.l.b16 %v208
    %v913 = vunpack.c.h.b16 %v208
    %v914 = vunpack.c.l.b16 %v209
    %v915 = vunpack.c.h.b16 %v209
    %v916 = vunpack.c.l.b16 %v210
    %v917 = vunpack.c.h.b16 %v210
    %v918 = vunpack.c.l.b16 %v211
    %v919 = vunpack.c.h.b16 %v211
    %v920 = vunpack.c.l.b16 %v212
    %v921 = vunpack.c.h.b16 %v212
    %v922 = vunpack.c.l.b16 %v213
    %v923 = vunpack.c.h.b16 %v213
    %v924 = vunpack.c.l.b16 %v214
    %v925 = vunpack.c.h.b16 %v214
    %v926 = vunpack.c.l.b16 %v215
    %v927 = vunpack.c.h.b16 %v215
    %v928 = vunpack.c.l.b16 %v216
    %v929 = vunpack.c.h.b16 %v216
    %v930 = vunpack.c.l.b16 %v217
    %v931 = vunpack.c.h.b16 %v217
    %v932 = vunpack.c.l.b16 %v218
    %v933 = vunpack.c.h.b16 %v218
    %v934 = vunpack.c.l.b16 %v219
    %v935 = vunpack.c.h.b16 %v219
    %v936 = vunpack.c.l.b16 %v220
    %v937 = vunpack.c.h.b16 %v220
    %v938 = vunpack.c.l.b16 %v221
    %v939 = vunpack.c.h.b16 %v221
    %v940 = vunpack.c.l.b16 %v222
    %v941 = vunpack.c.h.b16 %v222
    %v942 = vunpack.c.l.b16 %v223
    %v943 = vunpack.c.h.b16 %v223
    %v944 = vunpack.c.l.b16 %v224
    %v945 = vunpack.c.h.b16 %v224
    %v946 = vunpack.c.l.b16 %v225
    %v947 = vunpack.c.h.b16 %v225
    %v948 = vunpack.c.l.b16 %v226
    %v949 = vunpack.c.h.b16 %v226
    %v950 = vunpack.c.l.b16 %v227
    %v951 = vunpack.c.h.b16 %v227
    %v952 = vunpack.c.l.b16 %v228
    %v953 = vunpack.c.h.b16 %v228
    %v954 = vunpack.c.l.b16 %v229
    %v955 = vunpack.c.h.b16 %v229
    %v956 = vunpack.c.l.b16 %v230
    %v957 = vunpack.c.h.b16 %v230
    %v958 = vunpack.c.l.b16 %v231
    %v959 = vunpack.c.h.b16 %v231
    %v960 = vunpack.c.l.b16 %v232
    %v961 = vunpack.c.h.b16 %v232
    %v962 = vunpack.c.l.b16 %v233
    %v963 = vunpack.c.h.b16 %v233
    %v964 = vunpack.c.l.b16 %v234
    %v965 = vunpack.c.h.b16 %v234
    %v966 = vunpack.c.l.b16 %v235
    %v967 = vunpack.c.h.b16 %v235
    %v968 = vunpack.c.l.b16 %v236
    %v969 = vunpack.c.h.b16 %v236
    %v970 = vunpack.c.l.b16 %v237
    %v971 = vunpack.c.h.b16 %v237
    %v972 = vunpack.c.l.b16 %v238
    %v973 = vunpack.c.h.b16 %v238
    %v974 = vunpack.c.l.b16 %v239
    %v975 = vunpack.c.h.b16 %v239
    %v976 = vunpack.c.l.b16 %v240
    %v977 = vunpack.c.h.b16 %v240
    %v978 = vunpack.c.l.b16 %v241
    %v979 = vunpack.c.h.b16 %v241
    %v980 = vunpack.c.l.b16 %v242
    %v981 = vunpack.c.h.b16 %v242
    %v982 = vunpack.c.l.b16 %v243
    %v983 = vunpack.c.h.b16 %v243
    %v984 = vunpack.c.l.b16 %v244
    %v985 = vunpack.c.h.b16 %v244
    %v986 = vunpack.c.l.b16 %v245
    %v987 = vunpack.c.h.b16 %v245
    %v988 = vunpack.c.l.b16 %v246
    %v989 = vunpack.c.h.b16 %v246
    %v990 = vunpack.c.l.b16 %v247
    %v991 = vunpack.c.h.b16 %v247
    %v992 = vunpack.c.l.b16 %v248
    %v993 = vunpack.c.h.b16 %v248
    %v994 = vunpack.c.l.b16 %v249
    %v995 = vunpack.c.h.b16 %v249
    %v996 = vunpack.c.l.b16 %v250
    %v997 = vunpack.c.h.b16 %v250
    %v998 = vunpack.c.l.b16 %v251
    %v999 = vunpack.c.h.b16 %v251
    %v1000 = vunpack.c.l.b16 %v252
    %v1001 = vunpack.c.h.b16 %v252
    %v1002 = vunpack.c.l.b16 %v253
    %v1003 = vunpack.c.h.b16 %v253
    %v1004 = vunpack.c.l.b16 %v254
    %v1005 = vunpack.c.h.b16 %v254
    %v1006 = vunpack.c.l.b16 %v255
    %v1007 = vunpack.c.h.b16 %v255
    %v1008 = vunpack.c.l.b16 %v256
    %v1009 = vunpack.c.h.b16 %v256
    %v1010 = vunpack.c.l.b16 %v257
    %v1011 = vunpack.c.h.b16 %v257
    %v1012 = vunpack.c.l.b16 %v258
    %v1013 = vunpack.c.h.b16 %v258
    %v1014 = vunpack.c.l.b16 %v259
    %v1015 = vunpack.c.h.b16 %v259
    %v1016 = vunpack.c.l.b16 %v260
    %v1017 = vunpack.c.h.b16 %v260
    %v1018 = vunpack.c.l.b16 %v261
    %v1019 = vunpack.c.h.b16 %v261
    %v1020 = vunpack.c.l.b16 %v262
    %v1021 = vunpack.c.h.b16 %v262
    %v1022 = vunpack.c.l.b16 %v263
    %v1023 = vunpack.c.h.b16 %v263
    %v1024 = vunpack.c.l.b16 %v264
    %v1025 = vunpack.c.h.b16 %v264
    %v1026 = vunpack.c.l.b16 %v265
    %v1027 = vunpack.c.h.b16 %v265
    %v1028 = vunpack.c.l.b16 %v266
    %v1029 = vunpack.c.h.b16 %v266
    %v1030 = vunpack.c.l.b16 %v267
    %v1031 = vunpack.c.h.b16 %v267
    %v1032 = vunpack.c.l.b16 %v268
    %v1033 = vunpack.c.h.b16 %v268
    %v1034 = vunpack.c.l.b16 %v269
    %v1035 = vunpack.c.h.b16 %v269
    %v1036 = vunpack.c.l.b16 %v270
    %v1037 = vunpack.c.h.b16 %v270
    %v1038 = vunpack.c.l.b16 %v271
    %v1039 = vunpack.c.h.b16 %v271
    %v1040 = vunpack.c.l.b16 %v272
    %v1041 = vunpack.c.h.b16 %v272
    %v1042 = vunpack.c.l.b16 %v273
    %v1043 = vunpack.c.h.b16 %v273
    %v1044 = vunpack.c.l.b16 %v274
    %v1045 = vunpack.c.h.b16 %v274
    %v1046 = vunpack.c.l.b16 %v275
    %v1047 = vunpack.c.h.b16 %v275
    %v1048 = vunpack.c.l.b16 %v276
    %v1049 = vunpack.c.h.b16 %v276
    %v1050 = vunpack.c.l.b16 %v277
    %v1051 = vunpack.c.h.b16 %v277
    %v1052 = vunpack.c.l.b16 %v278
    %v1053 = vunpack.c.h.b16 %v278
    %v1054 = vunpack.c.l.b16 %v279
    %v1055 = vunpack.c.h.b16 %v279
    %v1056 = vunpack.c.l.b16 %v280
    %v1057 = vunpack.c.h.b16 %v280
    %v1058 = vunpack.c.l.b16 %v281
    %v1059 = vunpack.c.h.b16 %v281
    %v1060 = vunpack.c.l.b16 %v282
    %v1061 = vunpack.c.h.b16 %v282
    %v1062 = vunpack.c.l.b16 %v283
    %v1063 = vunpack.c.h.b16 %v283
    %v1064 = vunpack.c.l.b16 %v284
    %v1065 = vunpack.c.h.b16 %v284
    %v1066 = vunpack.c.l.b16 %v285
    %v1067 = vunpack.c.h.b16 %v285
    %v1068 = vunpack.c.l.b16 %v286
    %v1069 = vunpack.c.h.b16 %v286
    %v1070 = vunpack.c.l.b16 %v287
    %v1071 = vunpack.c.h.b16 %v287
    %v1072 = vunpack.c.l.b16 %v288
    %v1073 = vunpack.c.h.b16 %v288
    %v1074 = vunpack.c.l.b16 %v289
    %v1075 = vunpack.c.h.b16 %v289
    %v1076 = vunpack.c.l.b16 %v290
    %v1077 = vunpack.c.h.b16 %v290
    %v1078 = vunpack.c.l.b16 %v291
    %v1079 = vunpack.c.h.b16 %v291
    %v1080 = vunpack.c.l.b16 %v292
    %v1081 = vunpack.c.h.b16 %v292
    %v1082 = vunpack.c.l.b16 %v293
    %v1083 = vunpack.c.h.b16 %v293
    %v1084 = vpack.c.b16 %v576, %v572
    %v1085 = vpack.c.b16 %v577, %v573
    %v1086 = vpack.c.b16 %v578, %v574
    %v1087 = vpack.c.b16 %v579, %v575
    %v1088 = vpack.c.b16 %v584, %v580
    %v1089 = vpack.c.b16 %v585, %v581
    %v1090 = vpack.c.b16 %v586, %v582
    %v1091 = vpack.c.b16 %v587, %v583
    %v1092 = vpack.c.b16 %v592, %v588
    %v1093 = vpack.c.b16 %v593, %v589
    %v1094 = vpack.c.b16 %v594, %v590
    %v1095 = vpack.c.b16 %v595, %v591
    %v1096 = vpack.c.b16 %v600, %v596
    %v1097 = vpack.c.b16 %v601, %v597
    %v1098 = vpack.c.b16 %v602, %v598
    %v1099 = vpack.c.b16 %v603, %v599
    %v1100 = vpack.c.b16 %v608, %v604
    %v1101 = vpack.c.b16 %v609, %v605
    %v1102 = vpack.c.b16 %v610, %v606
    %v1103 = vpack.c.b16 %v611, %v607
    %v1104 = vpack.c.b16 %v616, %v612
    %v1105 = vpack.c.b16 %v617, %v613
    %v1106 = vpack.c.b16 %v618, %v614
    %v1107 = vpack.c.b16 %v619, %v615
    %v1108 = vpack.c.b16 %v624, %v620
    %v1109 = vpack.c.b16 %v625, %v621
    %v1110 = vpack.c.b16 %v626, %v622
    %v1111 = vpack.c.b16 %v627, %v623
    %v1112 = vpack.c.b16 %v632, %v628
    %v1113 = vpack.c.b16 %v633, %v629
    %v1114 = vpack.c.b16 %v634, %v630
    %v1115 = vpack.c.b16 %v635, %v631
    %v1116 = vpack.c.b16 %v640, %v636
    %v1117 = vpack.c.b16 %v641, %v637
    %v1118 = vpack.c.b16 %v642, %v638
    %v1119 = vpack.c.b16 %v643, %v639
    %v1120 = vpack.c.b16 %v648, %v644
    %v1121 = vpack.c.b16 %v649, %v645
    %v1122 = vpack.c.b16 %v650, %v646
    %v1123 = vpack.c.b16 %v651, %v647
    %v1124 = vpack.c.b16 %v656, %v652
    %v1125 = vpack.c.b16 %v657, %v653
    %v1126 = vpack.c.b16 %v658, %v654
    %v1127 = vpack.c.b16 %v659, %v655
    %v1128 = vpack.c.b16 %v664, %v660
    %v1129 = vpack.c.b16 %v665, %v661
    %v1130 = vpack.c.b16 %v666, %v662
    %v1131 = vpack.c.b16 %v667, %v663
    %v1132 = vpack.c.b16 %v672, %v668
    %v1133 = vpack.c.b16 %v673, %v669
    %v1134 = vpack.c.b16 %v674, %v670
    %v1135 = vpack.c.b16 %v675, %v671
    %v1136 = vpack.c.b16 %v680, %v676
    %v1137 = vpack.c.b16 %v681, %v677
    %v1138 = vpack.c.b16 %v682, %v678
    %v1139 = vpack.c.b16 %v683, %v679
    %v1140 = vpack.c.b16 %v688, %v684
    %v1141 = vpack.c.b16 %v689, %v685
    %v1142 = vpack.c.b16 %v690, %v686
    %v1143 = vpack.c.b16 %v691, %v687
    %v1144 = vpack.c.b16 %v696, %v692
    %v1145 = vpack.c.b16 %v697, %v693
    %v1146 = vpack.c.b16 %v698, %v694
    %v1147 = vpack.c.b16 %v699, %v695
    %v1148 = vpack.c.b16 %v704, %v700
    %v1149 = vpack.c.b16 %v705, %v701
    %v1150 = vpack.c.b16 %v706, %v702
    %v1151 = vpack.c.b16 %v707, %v703
    %v1152 = vpack.c.b16 %v712, %v708
    %v1153 = vpack.c.b16 %v713, %v709
    %v1154 = vpack.c.b16 %v714, %v710
    %v1155 = vpack.c.b16 %v715, %v711
    %v1156 = vpack.c.b16 %v720, %v716
    %v1157 = vpack.c.b16 %v721, %v717
    %v1158 = vpack.c.b16 %v722, %v718
    %v1159 = vpack.c.b16 %v723, %v719
    %v1160 = vpack.c.b16 %v728, %v724
    %v1161 = vpack.c.b16 %v729, %v725
    %v1162 = vpack.c.b16 %v730, %v726
    %v1163 = vpack.c.b16 %v731, %v727
    %v1164 = vpack.c.b16 %v736, %v732
    %v1165 = vpack.c.b16 %v737, %v733
    %v1166 = vpack.c.b16 %v738, %v734
    %v1167 = vpack.c.b16 %v739, %v735
    %v1168 = vpack.c.b16 %v744, %v740
    %v1169 = vpack.c.b16 %v745, %v741
    %v1170 = vpack.c.b16 %v746, %v742
    %v1171 = vpack.c.b16 %v747, %v743
    %v1172 = vpack.c.b16 %v752, %v748
    %v1173 = vpack.c.b16 %v753, %v749
    %v1174 = vpack.c.b16 %v754, %v750
    %v1175 = vpack.c.b16 %v755, %v751
    %v1176 = vpack.c.b16 %v760, %v756
    %v1177 = vpack.c.b16 %v761, %v757
    %v1178 = vpack.c.b16 %v762, %v758
    %v1179 = vpack.c.b16 %v763, %v759
    %v1180 = vpack.c.b16 %v768, %v764
    %v1181 = vpack.c.b16 %v769, %v765
    %v1182 = vpack.c.b16 %v770, %v766
    %v1183 = vpack.c.b16 %v771, %v767
    %v1184 = vpack.c.b16 %v776, %v772
    %v1185 = vpack.c.b16 %v777, %v773
    %v1186 = vpack.c.b16 %v778, %v774
    %v1187 = vpack.c.b16 %v779, %v775
    %v1188 = vpack.c.b16 %v784, %v780
    %v1189 = vpack.c.b16 %v785, %v781
    %v1190 = vpack.c.b16 %v786, %v782
    %v1191 = vpack.c.b16 %v787, %v783
    %v1192 = vpack.c.b16 %v792, %v788
    %v1193 = vpack.c.b16 %v793, %v789
    %v1194 = vpack.c.b16 %v794, %v790
    %v1195 = vpack.c.b16 %v795, %v791
    %v1196 = vpack.c.b16 %v800, %v796
    %v1197 = vpack.c.b16 %v801, %v797
    %v1198 = vpack.c.b16 %v802, %v798
    %v1199 = vpack.c.b16 %v803, %v799
    %v1200 = vpack.c.b16 %v808, %v804
    %v1201 = vpack.c.b16 %v809, %v805
    %v1202 = vpack.c.b16 %v810, %v806
    %v1203 = vpack.c.b16 %v811, %v807
    %v1204 = vpack.c.b16 %v816, %v812
    %v1205 = vpack.c.b16 %v817, %v813
    %v1206 = vpack.c.b16 %v818, %v814
    %v1207 = vpack.c.b16 %v819, %v815
    %v1208 = vpack.c.b16 %v824, %v820
    %v1209 = vpack.c.b16 %v825, %v821
    %v1210 = vpack.c.b16 %v826, %v822
    %v1211 = vpack.c.b16 %v827, %v823
    %v1212 = vpack.c.b16 %v832, %v828
    %v1213 = vpack.c.b16 %v833, %v829
    %v1214 = vpack.c.b16 %v834, %v830
    %v1215 = vpack.c.b16 %v835, %v831
    %v1216 = vpack.c.b16 %v840, %v836
    %v1217 = vpack.c.b16 %v841, %v837
    %v1218 = vpack.c.b16 %v842, %v838
    %v1219 = vpack.c.b16 %v843, %v839
    %v1220 = vpack.c.b16 %v848, %v844
    %v1221 = vpack.c.b16 %v849, %v845
    %v1222 = vpack.c.b16 %v850, %v846
    %v1223 = vpack.c.b16 %v851, %v847
    %v1224 = vpack.c.b16 %v856, %v852
    %v1225 = vpack.c.b16 %v857, %v853
    %v1226 = vpack.c.b16 %v858, %v854
    %v1227 = vpack.c.b16 %v859, %v855
    %v1228 = vpack.c.b16 %v864, %v860
    %v1229 = vpack.c.b16 %v865, %v861
    %v1230 = vpack.c.b16 %v866, %v862
    %v1231 = vpack.c.b16 %v867, %v863
    %v1232 = vpack.c.b16 %v872, %v868
    %v1233 = vpack.c.b16 %v873, %v869
    %v1234 = vpack.c.b16 %v874, %v870
    %v1235 = vpack.c.b16 %v875, %v871
    %v1236 = vpack.c.b16 %v880, %v876
    %v1237 = vpack.c.b16 %v881, %v877
    %v1238 = vpack.c.b16 %v882, %v878
    %v1239 = vpack.c.b16 %v883, %v879
    %v1240 = vpack.c.b16 %v888, %v884
    %v1241 = vpack.c.b16 %v889, %v885
    %v1242 = vpack.c.b16 %v890, %v886
    %v1243 = vpack.c.b16 %v891, %v887
    %v1244 = vpack.c.b16 %v896, %v892
    %v1245 = vpack.c.b16 %v897, %v893
    %v1246 = vpack.c.b16 %v898, %v894
    %v1247 = vpack.c.b16 %v899, %v895
    %v1248 = vpack.c.b16 %v904, %v900
    %v1249 = vpack.c.b16 %v905, %v901
    %v1250 = vpack.c.b16 %v906, %v902
    %v1251 = vpack.c.b16 %v907, %v903
    %v1252 = vpack.c.b16 %v912, %v908
    %v1253 = vpack.c.b16 %v913, %v909
    %v1254 = vpack.c.b16 %v914, %v910
    %v1255 = vpack.c.b16 %v915, %v911
    %v1256 = vpack.c.b16 %v920, %v916
    %v1257 = vpack.c.b16 %v921, %v917
    %v1258 = vpack.c.b16 %v922, %v918
    %v1259 = vpack.c.b16 %v923, %v919
    %v1260 = vpack.c.b16 %v928, %v924
    %v1261 = vpack.c.b16 %v929, %v925
    %v1262 = vpack.c.b16 %v930, %v926
    %v1263 = vpack.c.b16 %v931, %v927
    %v1264 = vpack.c.b16 %v936, %v932
    %v1265 = vpack.c.b16 %v937, %v933
    %v1266 = vpack.c.b16 %v938, %v934
    %v1267 = vpack.c.b16 %v939, %v935
    %v1268 = vpack.c.b16 %v944, %v940
    %v1269 = vpack.c.b16 %v945, %v941
    %v1270 = vpack.c.b16 %v946, %v942
    %v1271 = vpack.c.b16 %v947, %v943
    %v1272 = vpack.c.b16 %v952, %v948
    %v1273 = vpack.c.b16 %v953, %v949
    %v1274 = vpack.c.b16 %v954, %v950
    %v1275 = vpack.c.b16 %v955, %v951
    %v1276 = vpack.c.b16 %v960, %v956
    %v1277 = vpack.c.b16 %v961, %v957
    %v1278 = vpack.c.b16 %v962, %v958
    %v1279 = vpack.c.b16 %v963, %v959
    %v1280 = vpack.c.b16 %v968, %v964
    %v1281 = vpack.c.b16 %v969, %v965
    %v1282 = vpack.c.b16 %v970, %v966
    %v1283 = vpack.c.b16 %v971, %v967
    %v1284 = vpack.c.b16 %v976, %v972
    %v1285 = vpack.c.b16 %v977, %v973
    %v1286 = vpack.c.b16 %v978, %v974
    %v1287 = vpack.c.b16 %v979, %v975
    %v1288 = vpack.c.b16 %v984, %v980
    %v1289 = vpack.c.b16 %v985, %v981
    %v1290 = vpack.c.b16 %v986, %v982
    %v1291 = vpack.c.b16 %v987, %v983
    %v1292 = vpack.c.b16 %v992, %v988
    %v1293 = vpack.c.b16 %v993, %v989
    %v1294 = vpack.c.b16 %v994, %v990
    %v1295 = vpack.c.b16 %v995, %v991
    %v1296 = vpack.c.b16 %v1000, %v996
    %v1297 = vpack.c.b16 %v1001, %v997
    %v1298 = vpack.c.b16 %v1002, %v998
    %v1299 = vpack.c.b16 %v1003, %v999
    %v1300 = vpack.c.b16 %v1008, %v1004
    %v1301 = vpack.c.b16 %v1009, %v1005
    %v1302 = vpack.c.b16 %v1010, %v1006
    %v1303 = vpack.c.b16 %v1011, %v1007
    %v1304 = vpack.c.b16 %v1016, %v1012
    %v1305 = vpack.c.b16 %v1017, %v1013
    %v1306 = vpack.c.b16 %v1018, %v1014
    %v1307 = vpack.c.b16 %v1019, %v1015
    %v1308 = vpack.c.b16 %v1024, %v1020
    %v1309 = vpack.c.b16 %v1025, %v1021
    %v1310 = vpack.c.b16 %v1026, %v1022
    %v1311 = vpack.c.b16 %v1027, %v1023
    %v1312 = vpack.c.b16 %v1032, %v1028
    %v1313 = vpack.c.b16 %v1033, %v1029
    %v1314 = vpack.c.b16 %v1034, %v1030
    %v1315 = vpack.c.b16 %v1035, %v1031
    %v1316 = vpack.c.b16 %v1040, %v1036
    %v1317 = vpack.c.b16 %v1041, %v1037
    %v1318 = vpack.c.b16 %v1042, %v1038
    %v1319 = vpack.c.b16 %v1043, %v1039
    %v1320 = vpack.c.b16 %v1048, %v1044
    %v1321 = vpack.c.b16 %v1049, %v1045
    %v1322 = vpack.c.b16 %v1050, %v1046
    %v1323 = vpack.c.b16 %v1051, %v1047
    %v1324 = vpack.c.b16 %v1056, %v1052
    %v1325 = vpack.c.b16 %v1057, %v1053
    %v1326 = vpack.c.b16 %v1058, %v1054
    %v1327 = vpack.c.b16 %v1059, %v1055
    %v1328 = vpack.c.b16 %v1064, %v1060
    %v1329 = vpack.c.b16 %v1065, %v1061
    %v1330 = vpack.c.b16 %v1066, %v1062
    %v1331 = vpack.c.b16 %v1067, %v1063
    %v1332 = vpack.c.b16 %v1072, %v1068
    %v1333 = vpack.c.b16 %v1073, %v1069
    %v1334 = vpack.c.b16 %v1074, %v1070
    %v1335 = vpack.c.b16 %v1075, %v1071
    %v1336 = vpack.c.b16 %v1080, %v1076
    %v1337 = vpack.c.b16 %v1081, %v1077
    %v1338 = vpack.c.b16 %v1082, %v1078
    %v1339 = vpack.c.b16 %v1083, %v1079
    %1596 = vmatprep.subr.bf16.mxu0 %v1085
    %1597 = vmatpush1.bf16.msra.mxu0 %v1084
    %1598 = vmatprep.subr.bf16.mxu0 %v1089
    %1599 = vmatpush1.bf16.msra.mxu0 %v1088
    %1600 = vmatprep.subr.bf16.mxu0 %v1093
    %1601 = vmatpush1.bf16.msra.mxu0 %v1092
    %1602 = vmatprep.subr.bf16.mxu0 %v1097
    %1603 = vmatpush1.bf16.msra.mxu0 %v1096
    %1604 = vmatprep.subr.bf16.mxu0 %v1101
    %1605 = vmatpush1.bf16.msra.mxu0 %v1100
    %1606 = vmatprep.subr.bf16.mxu0 %v1105
    %1607 = vmatpush1.bf16.msra.mxu0 %v1104
    %1608 = vmatprep.subr.bf16.mxu0 %v1109
    %1609 = vmatpush1.bf16.msra.mxu0 %v1108
    %1610 = vmatprep.subr.bf16.mxu0 %v1113
    %1611 = vmatpush1.bf16.msra.mxu0 %v1112
    %1612 = vmatprep.subr.bf16.mxu0 %v1117
    %1613 = vmatpush1.bf16.msra.mxu0 %v1116
    %1614 = vmatprep.subr.bf16.mxu0 %v1121
    %1615 = vmatpush1.bf16.msra.mxu0 %v1120
    %1616 = vmatprep.subr.bf16.mxu0 %v1125
    %1617 = vmatpush1.bf16.msra.mxu0 %v1124
    %1618 = vmatprep.subr.bf16.mxu0 %v1129
    %1619 = vmatpush1.bf16.msra.mxu0 %v1128
    %1620 = vmatprep.subr.bf16.mxu0 %v1133
    %1621 = vmatpush1.bf16.msra.mxu0 %v1132
    %1622 = vmatprep.subr.bf16.mxu0 %v1137
    %1623 = vmatpush1.bf16.msra.mxu0 %v1136
    %1624 = vmatprep.subr.bf16.mxu0 %v1141
    %1625 = vmatpush1.bf16.msra.mxu0 %v1140
    %1626 = vmatprep.subr.bf16.mxu0 %v1145
    %1627 = vmatpush1.bf16.msra.mxu0 %v1144
    %1628 = vmatprep.mubr.bf16.mxu0 %v31
    %1629 = vmatmul.mubr.bf16.gmra.mrb[0].mxu0 %v30
    %v1630 = vpop.f32.mrb[0].mxu0
    %v1631 = vadd.f32 %v299, %v1630
    %v1632 = vpop.f32.mrb[0].mxu0
    %v1633 = vadd.f32 %v303, %v1632
    %v1634 = vpop.f32.mrb[0].mxu0
    %v1635 = vpop.f32.mrb[0].mxu0
    %1636 = vdwg.mxu0
    %1637 = vmatprep.subr.bf16.mxu0 %v1149
    %1638 = vmatpush1.bf16.msra.mxu0 %v1148
    %1639 = vmatprep.subr.bf16.mxu0 %v1153
    %1640 = vmatpush1.bf16.msra.mxu0 %v1152
    %1641 = vmatprep.subr.bf16.mxu0 %v1157
    %1642 = vmatpush1.bf16.msra.mxu0 %v1156
    %1643 = vmatprep.subr.bf16.mxu0 %v1161
    %1644 = vmatpush1.bf16.msra.mxu0 %v1160
    %1645 = vmatprep.subr.bf16.mxu0 %v1165
    %1646 = vmatpush1.bf16.msra.mxu0 %v1164
    %1647 = vmatprep.subr.bf16.mxu0 %v1169
    %1648 = vmatpush1.bf16.msra.mxu0 %v1168
    %1649 = vmatprep.subr.bf16.mxu0 %v1173
    %1650 = vmatpush1.bf16.msra.mxu0 %v1172
    %1651 = vmatprep.subr.bf16.mxu0 %v1177
    %1652 = vmatpush1.bf16.msra.mxu0 %v1176
    %1653 = vmatprep.subr.bf16.mxu0 %v1181
    %1654 = vmatpush1.bf16.msra.mxu0 %v1180
    %1655 = vmatprep.subr.bf16.mxu0 %v1185
    %1656 = vmatpush1.bf16.msra.mxu0 %v1184
    %1657 = vmatprep.subr.bf16.mxu0 %v1189
    %1658 = vmatpush1.bf16.msra.mxu0 %v1188
    %1659 = vmatprep.subr.bf16.mxu0 %v1193
    %1660 = vmatpush1.bf16.msra.mxu0 %v1192
    %1661 = vmatprep.subr.bf16.mxu0 %v1197
    %1662 = vmatpush1.bf16.msra.mxu0 %v1196
    %1663 = vmatprep.subr.bf16.mxu0 %v1201
    %1664 = vmatpush1.bf16.msra.mxu0 %v1200
    %1665 = vmatprep.subr.bf16.mxu0 %v1205
    %1666 = vmatpush1.bf16.msra.mxu0 %v1204
    %1667 = vmatprep.subr.bf16.mxu0 %v1209
    %1668 = vmatpush1.bf16.msra.mxu0 %v1208
    %1669 = vmatprep.mubr.bf16.mxu0 %v33
    %1670 = vmatmul.mubr.bf16.gmra.mrb[0].mxu0 %v32
    %v1671 = vpop.f32.mrb[0].mxu0
    %v1672 = vadd.f32 %v1631, %v1671
    %v1673 = vpop.f32.mrb[0].mxu0
    %v1674 = vadd.f32 %v1633, %v1673
    %v1675 = vpop.f32.mrb[0].mxu0
    %v1676 = vpop.f32.mrb[0].mxu0
    %1677 = vdwg.mxu0
    %1678 = vmatprep.subr.bf16.mxu0 %v1213
    %1679 = vmatpush1.bf16.msra.mxu0 %v1212
    %1680 = vmatprep.subr.bf16.mxu0 %v1217
    %1681 = vmatpush1.bf16.msra.mxu0 %v1216
    %1682 = vmatprep.subr.bf16.mxu0 %v1221
    %1683 = vmatpush1.bf16.msra.mxu0 %v1220
    %1684 = vmatprep.subr.bf16.mxu0 %v1225
    %1685 = vmatpush1.bf16.msra.mxu0 %v1224
    %1686 = vmatprep.subr.bf16.mxu0 %v1229
    %1687 = vmatpush1.bf16.msra.mxu0 %v1228
    %1688 = vmatprep.subr.bf16.mxu0 %v1233
    %1689 = vmatpush1.bf16.msra.mxu0 %v1232
    %1690 = vmatprep.subr.bf16.mxu0 %v1237
    %1691 = vmatpush1.bf16.msra.mxu0 %v1236
    %1692 = vmatprep.subr.bf16.mxu0 %v1241
    %1693 = vmatpush1.bf16.msra.mxu0 %v1240
    %1694 = vmatprep.subr.bf16.mxu0 %v1245
    %1695 = vmatpush1.bf16.msra.mxu0 %v1244
    %1696 = vmatprep.subr.bf16.mxu0 %v1249
    %1697 = vmatpush1.bf16.msra.mxu0 %v1248
    %1698 = vmatprep.subr.bf16.mxu0 %v1253
    %1699 = vmatpush1.bf16.msra.mxu0 %v1252
    %1700 = vmatprep.subr.bf16.mxu0 %v1257
    %1701 = vmatpush1.bf16.msra.mxu0 %v1256
    %1702 = vmatprep.subr.bf16.mxu0 %v1261
    %1703 = vmatpush1.bf16.msra.mxu0 %v1260
    %1704 = vmatprep.subr.bf16.mxu0 %v1265
    %1705 = vmatpush1.bf16.msra.mxu0 %v1264
    %1706 = vmatprep.subr.bf16.mxu0 %v1269
    %1707 = vmatpush1.bf16.msra.mxu0 %v1268
    %1708 = vmatprep.subr.bf16.mxu0 %v1273
    %1709 = vmatpush1.bf16.msra.mxu0 %v1272
    %1710 = vmatprep.mubr.bf16.mxu0 %v35
    %1711 = vmatmul.mubr.bf16.gmra.mrb[0].mxu0 %v34
    %v1712 = vpop.f32.mrb[0].mxu0
    %v1713 = vadd.f32 %v1672, %v1712
    %v1714 = vpop.f32.mrb[0].mxu0
    %v1715 = vadd.f32 %v1674, %v1714
    %v1716 = vpop.f32.mrb[0].mxu0
    %v1717 = vpop.f32.mrb[0].mxu0
    %1718 = vdwg.mxu0
    %1719 = vmatprep.subr.bf16.mxu0 %v1277
    %1720 = vmatpush1.bf16.msra.mxu0 %v1276
    %1721 = vmatprep.subr.bf16.mxu0 %v1281
    %1722 = vmatpush1.bf16.msra.mxu0 %v1280
    %1723 = vmatprep.subr.bf16.mxu0 %v1285
    %1724 = vmatpush1.bf16.msra.mxu0 %v1284
    %1725 = vmatprep.subr.bf16.mxu0 %v1289
    %1726 = vmatpush1.bf16.msra.mxu0 %v1288
    %1727 = vmatprep.subr.bf16.mxu0 %v1293
    %1728 = vmatpush1.bf16.msra.mxu0 %v1292
    %1729 = vmatprep.subr.bf16.mxu0 %v1297
    %1730 = vmatpush1.bf16.msra.mxu0 %v1296
    %1731 = vmatprep.subr.bf16.mxu0 %v1301
    %1732 = vmatpush1.bf16.msra.mxu0 %v1300
    %1733 = vmatprep.subr.bf16.mxu0 %v1305
    %1734 = vmatpush1.bf16.msra.mxu0 %v1304
    %1735 = vmatprep.subr.bf16.mxu0 %v1309
    %1736 = vmatpush1.bf16.msra.mxu0 %v1308
    %1737 = vmatprep.subr.bf16.mxu0 %v1313
    %1738 = vmatpush1.bf16.msra.mxu0 %v1312
    %1739 = vmatprep.subr.bf16.mxu0 %v1317
    %1740 = vmatpush1.bf16.msra.mxu0 %v1316
    %1741 = vmatprep.subr.bf16.mxu0 %v1321
    %1742 = vmatpush1.bf16.msra.mxu0 %v1320
    %1743 = vmatprep.subr.bf16.mxu0 %v1325
    %1744 = vmatpush1.bf16.msra.mxu0 %v1324
    %1745 = vmatprep.subr.bf16.mxu0 %v1329
    %1746 = vmatpush1.bf16.msra.mxu0 %v1328
    %1747 = vmatprep.subr.bf16.mxu0 %v1333
    %1748 = vmatpush1.bf16.msra.mxu0 %v1332
    %1749 = vmatprep.subr.bf16.mxu0 %v1337
    %1750 = vmatpush1.bf16.msra.mxu0 %v1336
    %1751 = vmatprep.mubr.bf16.mxu0 %v37
    %1752 = vmatmul.mubr.bf16.gmra.mrb[0].mxu0 %v36
    %v1753 = vpop.f32.mrb[0].mxu0
    %v1754 = vadd.f32 %v1713, %v1753
    %v1755 = vpop.f32.mrb[0].mxu0
    %v1756 = vadd.f32 %v1715, %v1755
    %v1757 = vpop.f32.mrb[0].mxu0
    %v1758 = vpop.f32.mrb[0].mxu0
    %1759 = vdwg.mxu0
    %1760 = vmatprep.subr.bf16.mxu0 %v1087
    %1761 = vmatpush1.bf16.msra.mxu0 %v1086
    %1762 = vmatprep.subr.bf16.mxu0 %v1091
    %1763 = vmatpush1.bf16.msra.mxu0 %v1090
    %1764 = vmatprep.subr.bf16.mxu0 %v1095
    %1765 = vmatpush1.bf16.msra.mxu0 %v1094
    %1766 = vmatprep.subr.bf16.mxu0 %v1099
    %1767 = vmatpush1.bf16.msra.mxu0 %v1098
    %1768 = vmatprep.subr.bf16.mxu0 %v1103
    %1769 = vmatpush1.bf16.msra.mxu0 %v1102
    %1770 = vmatprep.subr.bf16.mxu0 %v1107
    %1771 = vmatpush1.bf16.msra.mxu0 %v1106
    %1772 = vmatprep.subr.bf16.mxu0 %v1111
    %1773 = vmatpush1.bf16.msra.mxu0 %v1110
    %1774 = vmatprep.subr.bf16.mxu0 %v1115
    %1775 = vmatpush1.bf16.msra.mxu0 %v1114
    %1776 = vmatprep.subr.bf16.mxu0 %v1119
    %1777 = vmatpush1.bf16.msra.mxu0 %v1118
    %1778 = vmatprep.subr.bf16.mxu0 %v1123
    %1779 = vmatpush1.bf16.msra.mxu0 %v1122
    %1780 = vmatprep.subr.bf16.mxu0 %v1127
    %1781 = vmatpush1.bf16.msra.mxu0 %v1126
    %1782 = vmatprep.subr.bf16.mxu0 %v1131
    %1783 = vmatpush1.bf16.msra.mxu0 %v1130
    %1784 = vmatprep.subr.bf16.mxu0 %v1135
    %1785 = vmatpush1.bf16.msra.mxu0 %v1134
    %1786 = vmatprep.subr.bf16.mxu0 %v1139
    %1787 = vmatpush1.bf16.msra.mxu0 %v1138
    %1788 = vmatprep.subr.bf16.mxu0 %v1143
    %1789 = vmatpush1.bf16.msra.mxu0 %v1142
    %1790 = vmatprep.subr.bf16.mxu0 %v1147
    %1791 = vmatpush1.bf16.msra.mxu0 %v1146
    %1792 = vmatprep.mubr.bf16.mxu0 %v31
    %1793 = vmatmul.mubr.bf16.gmra.mrb[0].mxu0 %v30
    %v1794 = vpop.f32.mrb[0].mxu0
    %v1795 = vadd.f32 %v307, %v1794
    %v1796 = vpop.f32.mrb[0].mxu0
    %v1797 = vadd.f32 %v311, %v1796
    %v1798 = vpop.f32.mrb[0].mxu0
    %v1799 = vpop.f32.mrb[0].mxu0
    %1800 = vdwg.mxu0
    %1801 = vmatprep.subr.bf16.mxu0 %v1151
    %1802 = vmatpush1.bf16.msra.mxu0 %v1150
    %1803 = vmatprep.subr.bf16.mxu0 %v1155
    %1804 = vmatpush1.bf16.msra.mxu0 %v1154
    %1805 = vmatprep.subr.bf16.mxu0 %v1159
    %1806 = vmatpush1.bf16.msra.mxu0 %v1158
    %1807 = vmatprep.subr.bf16.mxu0 %v1163
    %1808 = vmatpush1.bf16.msra.mxu0 %v1162
    %1809 = vmatprep.subr.bf16.mxu0 %v1167
    %1810 = vmatpush1.bf16.msra.mxu0 %v1166
    %1811 = vmatprep.subr.bf16.mxu0 %v1171
    %1812 = vmatpush1.bf16.msra.mxu0 %v1170
    %1813 = vmatprep.subr.bf16.mxu0 %v1175
    %1814 = vmatpush1.bf16.msra.mxu0 %v1174
    %1815 = vmatprep.subr.bf16.mxu0 %v1179
    %1816 = vmatpush1.bf16.msra.mxu0 %v1178
    %1817 = vmatprep.subr.bf16.mxu0 %v1183
    %1818 = vmatpush1.bf16.msra.mxu0 %v1182
    %1819 = vmatprep.subr.bf16.mxu0 %v1187
    %1820 = vmatpush1.bf16.msra.mxu0 %v1186
    %1821 = vmatprep.subr.bf16.mxu0 %v1191
    %1822 = vmatpush1.bf16.msra.mxu0 %v1190
    %1823 = vmatprep.subr.bf16.mxu0 %v1195
    %1824 = vmatpush1.bf16.msra.mxu0 %v1194
    %1825 = vmatprep.subr.bf16.mxu0 %v1199
    %1826 = vmatpush1.bf16.msra.mxu0 %v1198
    %1827 = vmatprep.subr.bf16.mxu0 %v1203
    %1828 = vmatpush1.bf16.msra.mxu0 %v1202
    %1829 = vmatprep.subr.bf16.mxu0 %v1207
    %1830 = vmatpush1.bf16.msra.mxu0 %v1206
    %1831 = vmatprep.subr.bf16.mxu0 %v1211
    %1832 = vmatpush1.bf16.msra.mxu0 %v1210
    %1833 = vmatprep.mubr.bf16.mxu0 %v33
    %1834 = vmatmul.mubr.bf16.gmra.mrb[0].mxu0 %v32
    %v1835 = vpop.f32.mrb[0].mxu0
    %v1836 = vadd.f32 %v1795, %v1835
    %v1837 = vpop.f32.mrb[0].mxu0
    %v1838 = vadd.f32 %v1797, %v1837
    %v1839 = vpop.f32.mrb[0].mxu0
    %v1840 = vpop.f32.mrb[0].mxu0
    %1841 = vdwg.mxu0
    %1842 = vmatprep.subr.bf16.mxu0 %v1215
    %1843 = vmatpush1.bf16.msra.mxu0 %v1214
    %1844 = vmatprep.subr.bf16.mxu0 %v1219
    %1845 = vmatpush1.bf16.msra.mxu0 %v1218
    %1846 = vmatprep.subr.bf16.mxu0 %v1223
    %1847 = vmatpush1.bf16.msra.mxu0 %v1222
    %1848 = vmatprep.subr.bf16.mxu0 %v1227
    %1849 = vmatpush1.bf16.msra.mxu0 %v1226
    %1850 = vmatprep.subr.bf16.mxu0 %v1231
    %1851 = vmatpush1.bf16.msra.mxu0 %v1230
    %1852 = vmatprep.subr.bf16.mxu0 %v1235
    %1853 = vmatpush1.bf16.msra.mxu0 %v1234
    %1854 = vmatprep.subr.bf16.mxu0 %v1239
    %1855 = vmatpush1.bf16.msra.mxu0 %v1238
    %1856 = vmatprep.subr.bf16.mxu0 %v1243
    %1857 = vmatpush1.bf16.msra.mxu0 %v1242
    %1858 = vmatprep.subr.bf16.mxu0 %v1247
    %1859 = vmatpush1.bf16.msra.mxu0 %v1246
    %1860 = vmatprep.subr.bf16.mxu0 %v1251
    %1861 = vmatpush1.bf16.msra.mxu0 %v1250
    %1862 = vmatprep.subr.bf16.mxu0 %v1255
    %1863 = vmatpush1.bf16.msra.mxu0 %v1254
    %1864 = vmatprep.subr.bf16.mxu0 %v1259
    %1865 = vmatpush1.bf16.msra.mxu0 %v1258
    %1866 = vmatprep.subr.bf16.mxu0 %v1263
    %1867 = vmatpush1.bf16.msra.mxu0 %v1262
    %1868 = vmatprep.subr.bf16.mxu0 %v1267
    %1869 = vmatpush1.bf16.msra.mxu0 %v1266
    %1870 = vmatprep.subr.bf16.mxu0 %v1271
    %1871 = vmatpush1.bf16.msra.mxu0 %v1270
    %1872 = vmatprep.subr.bf16.mxu0 %v1275
    %1873 = vmatpush1.bf16.msra.mxu0 %v1274
    %1874 = vmatprep.mubr.bf16.mxu0 %v35
    %1875 = vmatmul.mubr.bf16.gmra.mrb[0].mxu0 %v34
    %v1876 = vpop.f32.mrb[0].mxu0
    %v1877 = vadd.f32 %v1836, %v1876
    %v1878 = vpop.f32.mrb[0].mxu0
    %v1879 = vadd.f32 %v1838, %v1878
    %v1880 = vpop.f32.mrb[0].mxu0
    %v1881 = vpop.f32.mrb[0].mxu0
    %1882 = vdwg.mxu0
    %1883 = vmatprep.subr.bf16.mxu0 %v1279
    %1884 = vmatpush1.bf16.msra.mxu0 %v1278
    %1885 = vmatprep.subr.bf16.mxu0 %v1283
    %1886 = vmatpush1.bf16.msra.mxu0 %v1282
    %1887 = vmatprep.subr.bf16.mxu0 %v1287
    %1888 = vmatpush1.bf16.msra.mxu0 %v1286
    %1889 = vmatprep.subr.bf16.mxu0 %v1291
    %1890 = vmatpush1.bf16.msra.mxu0 %v1290
    %1891 = vmatprep.subr.bf16.mxu0 %v1295
    %1892 = vmatpush1.bf16.msra.mxu0 %v1294
    %1893 = vmatprep.subr.bf16.mxu0 %v1299
    %1894 = vmatpush1.bf16.msra.mxu0 %v1298
    %1895 = vmatprep.subr.bf16.mxu0 %v1303
    %1896 = vmatpush1.bf16.msra.mxu0 %v1302
    %1897 = vmatprep.subr.bf16.mxu0 %v1307
    %1898 = vmatpush1.bf16.msra.mxu0 %v1306
    %1899 = vmatprep.subr.bf16.mxu0 %v1311
    %1900 = vmatpush1.bf16.msra.mxu0 %v1310
    %1901 = vmatprep.subr.bf16.mxu0 %v1315
    %1902 = vmatpush1.bf16.msra.mxu0 %v1314
    %1903 = vmatprep.subr.bf16.mxu0 %v1319
    %1904 = vmatpush1.bf16.msra.mxu0 %v1318
    %1905 = vmatprep.subr.bf16.mxu0 %v1323
    %1906 = vmatpush1.bf16.msra.mxu0 %v1322
    %1907 = vmatprep.subr.bf16.mxu0 %v1327
    %1908 = vmatpush1.bf16.msra.mxu0 %v1326
    %1909 = vmatprep.subr.bf16.mxu0 %v1331
    %1910 = vmatpush1.bf16.msra.mxu0 %v1330
    %1911 = vmatprep.subr.bf16.mxu0 %v1335
    %1912 = vmatpush1.bf16.msra.mxu0 %v1334
    %1913 = vmatprep.subr.bf16.mxu0 %v1339
    %1914 = vmatpush1.bf16.msra.mxu0 %v1338
    %1915 = vmatprep.mubr.bf16.mxu0 %v37
    %1916 = vmatmul.mubr.bf16.gmra.mrb[0].mxu0 %v36
    %v1917 = vpop.f32.mrb[0].mxu0
    %v1918 = vadd.f32 %v1877, %v1917
    %v1919 = vpop.f32.mrb[0].mxu0
    %v1920 = vadd.f32 %v1879, %v1919
    %v1921 = vpop.f32.mrb[0].mxu0
    %v1922 = vpop.f32.mrb[0].mxu0
    %1923 = vdwg.mxu0
    %v1924 = vmax.f32 %v1754, 0.0
    %v1925 = vmax.f32 %v1756, 0.0
    %v1926 = vmax.f32 %v1918, 0.0
    %v1927 = vmax.f32 %v1920, 0.0
    %v1928 = vpack.c.bf16 %v1924, %v1924
    %v1929 = vpack.c.bf16 %v1925, %v1925
    %v1930 = vpack.c.bf16 %v1926, %v1926
    %v1931 = vpack.c.bf16 %v1927, %v1927
    %v1932 = vld [vmem:[%s3] sm:$0xf]
    %v1933 = vld [vmem:[%s3 + $0x4] sm:$0xf]
    %v1934 = vld [vmem:[%s3 + $0x8] sm:$0xf]
    %v1935 = vld [vmem:[%s3 + $0xc] sm:$0xf]
    %v1936 = vld [vmem:[%s3 + $0x10] sm:$0xf]
    %v1937 = vld [vmem:[%s3 + $0x14] sm:$0xf]
    %v1938 = vld [vmem:[%s3 + $0x18] sm:$0xf]
    %v1939 = vld [vmem:[%s3 + $0x1c] sm:$0xf]
    %v1940 = vld [vmem:[%s3 + $0x20] sm:$0xf]
    %v1941 = vld [vmem:[%s3 + $0x24] sm:$0xf]
    %v1942 = vld [vmem:[%s3 + $0x28] sm:$0xf]
    %v1943 = vld [vmem:[%s3 + $0x2c] sm:$0xf]
    %v1944 = vld [vmem:[%s3 + $0x30] sm:$0xf]
    %v1945 = vld [vmem:[%s3 + $0x34] sm:$0xf]
    %v1946 = vld [vmem:[%s3 + $0x38] sm:$0xf]
    %v1947 = vld [vmem:[%s3 + $0x3c] sm:$0xf]
    %v1948 = vld [vmem:[%s3 + $0x40] sm:$0xf]
    %v1949 = vld [vmem:[%s3 + $0x44] sm:$0xf]
    %v1950 = vld [vmem:[%s3 + $0x48] sm:$0xf]
    %v1951 = vld [vmem:[%s3 + $0x4c] sm:$0xf]
    %v1952 = vld [vmem:[%s3 + $0x50] sm:$0xf]
    %v1953 = vld [vmem:[%s3 + $0x54] sm:$0xf]
    %v1954 = vld [vmem:[%s3 + $0x58] sm:$0xf]
    %v1955 = vld [vmem:[%s3 + $0x5c] sm:$0xf]
    %v1956 = vld [vmem:[%s3 + $0x60] sm:$0xf]
    %v1957 = vld [vmem:[%s3 + $0x64] sm:$0xf]
    %v1958 = vld [vmem:[%s3 + $0x68] sm:$0xf]
    %v1959 = vld [vmem:[%s3 + $0x6c] sm:$0xf]
    %v1960 = vld [vmem:[%s3 + $0x70] sm:$0xf]
    %v1961 = vld [vmem:[%s3 + $0x74] sm:$0xf]
    %v1962 = vld [vmem:[%s3 + $0x78] sm:$0xf]
    %v1963 = vld [vmem:[%s3 + $0x7c] sm:$0xf]
    %v1964 = vld [vmem:[%s3 + $0x80] sm:$0xf]
    %v1965 = vld [vmem:[%s3 + $0x84] sm:$0xf]
    %v1966 = vld [vmem:[%s3 + $0x88] sm:$0xf]
    %v1967 = vld [vmem:[%s3 + $0x8c] sm:$0xf]
    %v1968 = vld [vmem:[%s3 + $0x90] sm:$0xf]
    %v1969 = vld [vmem:[%s3 + $0x94] sm:$0xf]
    %v1970 = vld [vmem:[%s3 + $0x98] sm:$0xf]
    %v1971 = vld [vmem:[%s3 + $0x9c] sm:$0xf]
    %v1972 = vld [vmem:[%s3 + $0xa0] sm:$0xf]
    %v1973 = vld [vmem:[%s3 + $0xa4] sm:$0xf]
    %v1974 = vld [vmem:[%s3 + $0xa8] sm:$0xf]
    %v1975 = vld [vmem:[%s3 + $0xac] sm:$0xf]
    %v1976 = vld [vmem:[%s3 + $0xb0] sm:$0xf]
    %v1977 = vld [vmem:[%s3 + $0xb4] sm:$0xf]
    %v1978 = vld [vmem:[%s3 + $0xb8] sm:$0xf]
    %v1979 = vld [vmem:[%s3 + $0xbc] sm:$0xf]
    %v1980 = vld [vmem:[%s3 + $0xc0] sm:$0xf]
    %v1981 = vld [vmem:[%s3 + $0xc4] sm:$0xf]
    %v1982 = vld [vmem:[%s3 + $0xc8] sm:$0xf]
    %v1983 = vld [vmem:[%s3 + $0xcc] sm:$0xf]
    %v1984 = vld [vmem:[%s3 + $0xd0] sm:$0xf]
    %v1985 = vld [vmem:[%s3 + $0xd4] sm:$0xf]
    %v1986 = vld [vmem:[%s3 + $0xd8] sm:$0xf]
    %v1987 = vld [vmem:[%s3 + $0xdc] sm:$0xf]
    %v1988 = vld [vmem:[%s3 + $0xe0] sm:$0xf]
    %v1989 = vld [vmem:[%s3 + $0xe4] sm:$0xf]
    %v1990 = vld [vmem:[%s3 + $0xe8] sm:$0xf]
    %v1991 = vld [vmem:[%s3 + $0xec] sm:$0xf]
    %v1992 = vld [vmem:[%s3 + $0xf0] sm:$0xf]
    %v1993 = vld [vmem:[%s3 + $0xf4] sm:$0xf]
    %v1994 = vld [vmem:[%s3 + $0xf8] sm:$0xf]
    %v1995 = vld [vmem:[%s3 + $0xfc] sm:$0xf]
    %v1996 = vld [vmem:[%s4] sm:$0x1]
    %v1998 = vlaneseq
    %v1999 = vshrl.u32 %v1998, 7
    %v2000 = vsub.s32 0, %v1999
    %v2001 = vrot.slane %v1996, %v2000
    %v2067 = vunpack.c.l.b16 %v1932
    %v2068 = vunpack.c.l.b16 %v1933
    %v2069 = vunpack.c.l.b16 %v1934
    %v2070 = vunpack.c.l.b16 %v1935
    %v2071 = vunpack.c.l.b16 %v1936
    %v2072 = vunpack.c.l.b16 %v1937
    %v2073 = vunpack.c.l.b16 %v1938
    %v2074 = vunpack.c.l.b16 %v1939
    %v2075 = vunpack.c.l.b16 %v1940
    %v2076 = vunpack.c.l.b16 %v1941
    %v2077 = vunpack.c.l.b16 %v1942
    %v2078 = vunpack.c.l.b16 %v1943
    %v2079 = vunpack.c.l.b16 %v1944
    %v2080 = vunpack.c.l.b16 %v1945
    %v2081 = vunpack.c.l.b16 %v1946
    %v2082 = vunpack.c.l.b16 %v1947
    %v2083 = vunpack.c.l.b16 %v1948
    %v2084 = vunpack.c.l.b16 %v1949
    %v2085 = vunpack.c.l.b16 %v1950
    %v2086 = vunpack.c.l.b16 %v1951
    %v2087 = vunpack.c.l.b16 %v1952
    %v2088 = vunpack.c.l.b16 %v1953
    %v2089 = vunpack.c.l.b16 %v1954
    %v2090 = vunpack.c.l.b16 %v1955
    %v2091 = vunpack.c.l.b16 %v1956
    %v2092 = vunpack.c.l.b16 %v1957
    %v2093 = vunpack.c.l.b16 %v1958
    %v2094 = vunpack.c.l.b16 %v1959
    %v2095 = vunpack.c.l.b16 %v1960
    %v2096 = vunpack.c.l.b16 %v1961
    %v2097 = vunpack.c.l.b16 %v1962
    %v2098 = vunpack.c.l.b16 %v1963
    %v2099 = vunpack.c.l.b16 %v1964
    %v2100 = vunpack.c.l.b16 %v1965
    %v2101 = vunpack.c.l.b16 %v1966
    %v2102 = vunpack.c.l.b16 %v1967
    %v2103 = vunpack.c.l.b16 %v1968
    %v2104 = vunpack.c.l.b16 %v1969
    %v2105 = vunpack.c.l.b16 %v1970
    %v2106 = vunpack.c.l.b16 %v1971
    %v2107 = vunpack.c.l.b16 %v1972
    %v2108 = vunpack.c.l.b16 %v1973
    %v2109 = vunpack.c.l.b16 %v1974
    %v2110 = vunpack.c.l.b16 %v1975
    %v2111 = vunpack.c.l.b16 %v1976
    %v2112 = vunpack.c.l.b16 %v1977
    %v2113 = vunpack.c.l.b16 %v1978
    %v2114 = vunpack.c.l.b16 %v1979
    %v2115 = vunpack.c.l.b16 %v1980
    %v2116 = vunpack.c.l.b16 %v1981
    %v2117 = vunpack.c.l.b16 %v1982
    %v2118 = vunpack.c.l.b16 %v1983
    %v2119 = vunpack.c.l.b16 %v1984
    %v2120 = vunpack.c.l.b16 %v1985
    %v2121 = vunpack.c.l.b16 %v1986
    %v2122 = vunpack.c.l.b16 %v1987
    %v2123 = vunpack.c.l.b16 %v1988
    %v2124 = vunpack.c.l.b16 %v1989
    %v2125 = vunpack.c.l.b16 %v1990
    %v2126 = vunpack.c.l.b16 %v1991
    %v2127 = vunpack.c.l.b16 %v1992
    %v2128 = vunpack.c.l.b16 %v1993
    %v2129 = vunpack.c.l.b16 %v1994
    %v2130 = vunpack.c.l.b16 %v1995
    %v2131 = vpack.c.b16 %v2068, %v2067
    %v2132 = vpack.c.b16 %v2070, %v2069
    %v2133 = vpack.c.b16 %v2072, %v2071
    %v2134 = vpack.c.b16 %v2074, %v2073
    %v2135 = vpack.c.b16 %v2076, %v2075
    %v2136 = vpack.c.b16 %v2078, %v2077
    %v2137 = vpack.c.b16 %v2080, %v2079
    %v2138 = vpack.c.b16 %v2082, %v2081
    %v2139 = vpack.c.b16 %v2084, %v2083
    %v2140 = vpack.c.b16 %v2086, %v2085
    %v2141 = vpack.c.b16 %v2088, %v2087
    %v2142 = vpack.c.b16 %v2090, %v2089
    %v2143 = vpack.c.b16 %v2092, %v2091
    %v2144 = vpack.c.b16 %v2094, %v2093
    %v2145 = vpack.c.b16 %v2096, %v2095
    %v2146 = vpack.c.b16 %v2098, %v2097
    %v2147 = vpack.c.b16 %v2100, %v2099
    %v2148 = vpack.c.b16 %v2102, %v2101
    %v2149 = vpack.c.b16 %v2104, %v2103
    %v2150 = vpack.c.b16 %v2106, %v2105
    %v2151 = vpack.c.b16 %v2108, %v2107
    %v2152 = vpack.c.b16 %v2110, %v2109
    %v2153 = vpack.c.b16 %v2112, %v2111
    %v2154 = vpack.c.b16 %v2114, %v2113
    %v2155 = vpack.c.b16 %v2116, %v2115
    %v2156 = vpack.c.b16 %v2118, %v2117
    %v2157 = vpack.c.b16 %v2120, %v2119
    %v2158 = vpack.c.b16 %v2122, %v2121
    %v2159 = vpack.c.b16 %v2124, %v2123
    %v2160 = vpack.c.b16 %v2126, %v2125
    %v2161 = vpack.c.b16 %v2128, %v2127
    %v2162 = vpack.c.b16 %v2130, %v2129
    %2195 = vmatprep.subr.bf16.mxu0 0
    %2196 = vmatpush1.bf16.msra.mxu0 %v2131
    %2197 = vmatprep.subr.bf16.mxu0 0
    %2198 = vmatpush1.bf16.msra.mxu0 %v2132
    %2199 = vmatprep.subr.bf16.mxu0 0
    %2200 = vmatpush1.bf16.msra.mxu0 %v2133
    %2201 = vmatprep.subr.bf16.mxu0 0
    %2202 = vmatpush1.bf16.msra.mxu0 %v2134
    %2203 = vmatprep.subr.bf16.mxu0 0
    %2204 = vmatpush1.bf16.msra.mxu0 %v2135
    %2205 = vmatprep.subr.bf16.mxu0 0
    %2206 = vmatpush1.bf16.msra.mxu0 %v2136
    %2207 = vmatprep.subr.bf16.mxu0 0
    %2208 = vmatpush1.bf16.msra.mxu0 %v2137
    %2209 = vmatprep.subr.bf16.mxu0 0
    %2210 = vmatpush1.bf16.msra.mxu0 %v2138
    %2211 = vmatprep.subr.bf16.mxu0 0
    %2212 = vmatpush1.bf16.msra.mxu0 %v2139
    %2213 = vmatprep.subr.bf16.mxu0 0
    %2214 = vmatpush1.bf16.msra.mxu0 %v2140
    %2215 = vmatprep.subr.bf16.mxu0 0
    %2216 = vmatpush1.bf16.msra.mxu0 %v2141
    %2217 = vmatprep.subr.bf16.mxu0 0
    %2218 = vmatpush1.bf16.msra.mxu0 %v2142
    %2219 = vmatprep.subr.bf16.mxu0 0
    %2220 = vmatpush1.bf16.msra.mxu0 %v2143
    %2221 = vmatprep.subr.bf16.mxu0 0
    %2222 = vmatpush1.bf16.msra.mxu0 %v2144
    %2223 = vmatprep.subr.bf16.mxu0 0
    %2224 = vmatpush1.bf16.msra.mxu0 %v2145
    %2225 = vmatprep.subr.bf16.mxu0 0
    %2226 = vmatpush1.bf16.msra.mxu0 %v2146
    %2227 = vmatprep.mubr.bf16.mxu0 %v1929
    %2228 = vmatmul.mubr.bf16.gmra.mrb[0].mxu0 %v1928
    %v2229 = vpop.f32.mrb[0].mxu0
    %v2230 = vadd.f32 %v2001, %v2229
    %v2231 = vpop.f32.mrb[0].mxu0
    %v2232 = vpop.f32.mrb[0].mxu0
    %v2233 = vpop.f32.mrb[0].mxu0
    %2234 = vdwg.mxu0
    %2235 = vmatprep.subr.bf16.mxu0 0
    %2236 = vmatpush1.bf16.msra.mxu0 %v2147
    %2237 = vmatprep.subr.bf16.mxu0 0
    %2238 = vmatpush1.bf16.msra.mxu0 %v2148
    %2239 = vmatprep.subr.bf16.mxu0 0
    %2240 = vmatpush1.bf16.msra.mxu0 %v2149
    %2241 = vmatprep.subr.bf16.mxu0 0
    %2242 = vmatpush1.bf16.msra.mxu0 %v2150
    %2243 = vmatprep.subr.bf16.mxu0 0
    %2244 = vmatpush1.bf16.msra.mxu0 %v2151
    %2245 = vmatprep.subr.bf16.mxu0 0
    %2246 = vmatpush1.bf16.msra.mxu0 %v2152
    %2247 = vmatprep.subr.bf16.mxu0 0
    %2248 = vmatpush1.bf16.msra.mxu0 %v2153
    %2249 = vmatprep.subr.bf16.mxu0 0
    %2250 = vmatpush1.bf16.msra.mxu0 %v2154
    %2251 = vmatprep.subr.bf16.mxu0 0
    %2252 = vmatpush1.bf16.msra.mxu0 %v2155
    %2253 = vmatprep.subr.bf16.mxu0 0
    %2254 = vmatpush1.bf16.msra.mxu0 %v2156
    %2255 = vmatprep.subr.bf16.mxu0 0
    %2256 = vmatpush1.bf16.msra.mxu0 %v2157
    %2257 = vmatprep.subr.bf16.mxu0 0
    %2258 = vmatpush1.bf16.msra.mxu0 %v2158
    %2259 = vmatprep.subr.bf16.mxu0 0
    %2260 = vmatpush1.bf16.msra.mxu0 %v2159
    %2261 = vmatprep.subr.bf16.mxu0 0
    %2262 = vmatpush1.bf16.msra.mxu0 %v2160
    %2263 = vmatprep.subr.bf16.mxu0 0
    %2264 = vmatpush1.bf16.msra.mxu0 %v2161
    %2265 = vmatprep.subr.bf16.mxu0 0
    %2266 = vmatpush1.bf16.msra.mxu0 %v2162
    %2267 = vmatprep.mubr.bf16.mxu0 %v1931
    %2268 = vmatmul.mubr.bf16.gmra.mrb[0].mxu0 %v1930
    %v2269 = vpop.f32.mrb[0].mxu0
    %v2270 = vadd.f32 %v2230, %v2269
    %v2271 = vpop.f32.mrb[0].mxu0
    %v2272 = vpop.f32.mrb[0].mxu0
    %v2273 = vpop.f32.mrb[0].mxu0
    %2274 = vdwg.mxu0
    %2275 = vst [vmem:[#allocation2] sm:$0xff] %v2270
    // Predicated region
    $region22: #{simple_model_forward.1} parent=1 // pred_check
      _
    $region23: #{simple_model_forward.1} parent=1 // pred_check_branch
      %2277 = sbr.rel (0) target = $region25
    $region24: #{simple_model_forward.1} parent=1 // pred_region
      %s2279 = ssub.s32 128, 128
      %2280 = vsyncadd [#allocation3], %s2279
      %s2282 = sshll.u32 [#allocation2], 4
      %s2283 = int_to_ptr.vmem [resolvable:$true] %s2282
      %2285 = dma.vmem_to_hbm [thread:$0]  %s2283, 128, %s5, [#allocation3]
    $region25: #{simple_model_forward.1} parent=1 // pred_fallthru
      _
    // Predicated region
    $region26: #{simple_model_forward.1} parent=1 // pred_check
      _
    $region27: #{simple_model_forward.1} parent=1 // pred_check_branch
      %2287 = sbr.rel (0) target = $region29
    $region28: #{simple_model_forward.1} parent=1 // pred_region
      %2288 = dma.done [#allocation3], 128
    $region29: #{simple_model_forward.1} parent=1 // pred_fallthru
      _
    %2289 = vsyncpa [#allocation3], 1

</llo_original>
